<compile_context>
chip_gen: v5e
topology: v5e:2x2
jax: 0.10.0
libtpu: 0.0.40
codegen_flags: <defaults>
</compile_context>

<pallas_src>
import functools

import numpy as np
import jax
import jax.numpy as jnp
from jax import lax
from jax.experimental import pallas as pl
from jax.experimental.pallas import tpu as pltpu

CLAMP_LO = 0
CLAMP_HI = int(0.2)     # == 0  (torch integer clamp semantics)

_LANE_TILE = 1024       # histogram lanes per inner tile (keeps the live vreg set small)


def _default_nsplit():
    """Use 2 only where the leading 'parallel' grid axis maps onto a second TensorCore."""
    try:
        kind = jax.devices()[0].device_kind.lower()
    except Exception:
        return 1
    return 2 if any(t in kind for t in ("v4", "v5p", "v7", "7x")) else 1


def _eb_kernel(x_ref, b_ref, w_ref, out_ref, *, K, C, TC, N_pad, clamp_hi, lane_tiles):
    g = pl.program_id(0)                    # megacore split (own accumulator rows)
    s = pl.program_id(1)                    # serial step over batches of TC samples
    n_s = pl.num_programs(1)

    @pl.when(s == 0)
    def _init():
        out_ref[...] = jnp.zeros_like(out_ref)          # (8, N_pad) int32, resident across s

    first = (g * n_s + s) * TC

    # Fully padded steps do no vector work at all (out_ref keeps its running counts).
    @pl.when(first < C)
    def _compute():
        # (x + bias).long() then integer clamp -> bin index per (sample, dim d, column k).
        # float->int astype truncates toward zero like torch .long(); lanes ordered d*K + k.
        idx = jnp.clip((x_ref[...] + b_ref[...]).astype(jnp.int32),
                       CLAMP_LO, clamp_hi)                                     # (TC, D*K)

        # Flatten all K multi-indices at once on the otherwise-idle MXU:
        #   flat[c, k] = sum_d idx[c, d*K + k] * K**(D-1-d)   (exact in f32 for K**D < 2**22)
        flat = jnp.dot(idx.astype(jnp.float32), w_ref[...],
                       preferred_element_type=jnp.float32).astype(jnp.int32)   # (TC, K)

        # Tail / padding samples: push their flat index out of [0, N_pad) so they never hit.
        row = lax.broadcasted_iota(jnp.int32, (TC, 1), 0)
        flat = flat + jnp.where(first + row < C, jnp.int32(0), jnp.int32(N_pad))

        # Stream 8 samples (one vreg sublane-group) at a time: compare / OR (dedup within a
        # sample) / widen / add into a vreg-resident (8, tile) partial, then one fused
        # read-modify-write of the resident output block per lane tile.  No spills.
        for base, size in lane_tiles:
            pos = lax.broadcasted_iota(jnp.int32, (8, size), 1) + base   # near-free constant
            acc = jnp.zeros((8, size), jnp.int32)
            for grp in range(TC // 8):
                r0 = grp * 8
                presence = None
                for k in range(K):               # duplicates within one sample count once
                    hit = pos == flat[r0:r0 + 8, k:k + 1]
                    presence = hit if presence is None else (presence | hit)
                acc = acc + presence.astype(jnp.int32)
            out_ref[:, base:base + size] += acc


def empirical_bayes_distribution(input_tensor, output_tensor, bias_input, bias_output,
                                 H, Fp, K, *, clamp_hi=CLAMP_HI, tc=128, nsplit=None):
    """input/output tensors in the PyTorch convention: (C, H, K) / (C, F, K)."""
    C = input_tensor.shape[0]
    D = H + Fp
    N = K ** D
    assert N < (1 << 22), "flat histogram index must stay exact in f32 / int32"
    N_pad = ((N + 127) // 128) * 128                    # lane-dense flat histogram axis

    if nsplit is None:
        nsplit = _default_nsplit()

    # Samples per grid step: multiple of 8, no bigger than one split's share of C (keeps the
    # tail small).  No VMEM-driven shrinking: with the iota scratch gone, per-step VMEM is
    # only the two (TC, D*K) f32 blocks plus the resident (8, N_pad) output block.
    per_split = -(-C // nsplit)
    TC = max(8, (int(tc) // 8) * 8)
    TC = min(TC, max(8, ((per_split + 7) // 8) * 8))

    S = pl.cdiv(pl.cdiv(C, TC), nsplit)                 # serial ("arbitrary") steps per split
    C_pad = nsplit * S * TC

    # Fuse input||output (and the two biases) along the feature axis: 2 DMA streams per step.
    x = jnp.concatenate([input_tensor, output_tensor], axis=1).astype(jnp.float32).reshape(C, D * K)
    b = jnp.concatenate([bias_input, bias_output], axis=1).astype(jnp.float32).reshape(C, D * K)
    if C_pad != C:
        x = jnp.pad(x, ((0, C_pad - C), (0, 0)))
        b = jnp.pad(b, ((0, C_pad - C), (0, 0)))

    # Mixed-radix strides for the in-kernel MXU flatten: W[d*K + k, k] = K**(D-1-d).
    w_np = np.zeros((D * K, K), np.float32)
    for d in range(D):
        for k in range(K):
            w_np[d * K + k, k] = float(K ** (D - 1 - d))
    w = jnp.asarray(w_np)

    # Histogram lane tiles (each a multiple of 128 lanes).
    lane_tiles, base = [], 0
    while base < N_pad:
        size = min(_LANE_TILE, N_pad - base)
        lane_tiles.append((base, size))
        base += size

    kernel = functools.partial(_eb_kernel, K=K, C=C, TC=TC, N_pad=N_pad,
                               clamp_hi=int(clamp_hi), lane_tiles=tuple(lane_tiles))
    counts = pl.pallas_call(
        kernel,
        out_shape=jax.ShapeDtypeStruct((nsplit * 8, N_pad), jnp.int32),
        grid_spec=pltpu.PrefetchScalarGridSpec(
            num_scalar_prefetch=0,
            grid=(nsplit, S),
            in_specs=[
                pl.BlockSpec((TC, D * K), lambda g, s: (g * S + s, 0)),
                pl.BlockSpec((TC, D * K), lambda g, s: (g * S + s, 0)),
                pl.BlockSpec((D * K, K), lambda g, s: (0, 0)),   # tiny constant, not re-fetched
            ],
            out_specs=pl.BlockSpec((8, N_pad), lambda g, s: (g, 0)),
        ),
        compiler_params=pltpu.CompilerParams(
            dimension_semantics=("parallel", "arbitrary")),
    )(x, b, w)

    # Fold the per-split / per-sublane-row integer partials, drop lane padding, normalize once.
    hist = counts.sum(axis=0)[:N].astype(jnp.float32) / jnp.float32(C)
    return hist.reshape((K,) * D)


def _reference(input_np, output_np, b_in_np, b_out_np, H, Fp, K, clamp_hi):
    """Pure NumPy re-implementation of the PyTorch forward (for validation)."""
    C = input_np.shape[0]
    in_idx = np.clip(np.trunc(input_np + b_in_np).astype(np.int64), CLAMP_LO, clamp_hi)
    out_idx = np.clip(np.trunc(output_np + b_out_np).astype(np.int64), CLAMP_LO, clamp_hi)
    hist = np.zeros((K,) * (H + Fp), dtype=np.float32)
    for c in range(C):
        cols = np.concatenate([in_idx[c], out_idx[c]], axis=0)  # (H+F, K)
        uniq = {tuple(int(v) for v in cols[:, k]) for k in range(K)}
        for t in uniq:
            hist[t] += 1.0
    return hist / np.float32(C)


if __name__ == "__main__":
    C, H, Fp, K = 300, 3, 2, 4   # histogram has K**(H+F) = 1024 bins; C exercises multi-step + tail

    key = jax.random.PRNGKey(0)
    k1, k2 = jax.random.split(key)
    input_tensor = jax.random.uniform(k1, (C, H, K), minval=0.0, maxval=float(K) - 1e-3)
    output_tensor = jax.random.uniform(k2, (C, Fp, K), minval=0.0, maxval=float(K) - 1e-3)

    # Parameters initialized exactly as in __init__ (torch.zeros), deterministic.
    bias_input = jnp.zeros((C, H, K), jnp.float32)
    bias_output = jnp.zeros((C, Fp, K), jnp.float32)

    # 1) Module semantics (integer clamp to [0, 0]).
    result = empirical_bayes_distribution(input_tensor, output_tensor,
                                          bias_input, bias_output, H, Fp, K)
    result = jax.block_until_ready(result)
    ref = _reference(np.asarray(input_tensor), np.asarray(output_tensor),
                     np.asarray(bias_input), np.asarray(bias_output), H, Fp, K, CLAMP_HI)
    np.testing.assert_allclose(np.asarray(result), ref, rtol=0, atol=1e-6)
    assert result.shape == (K,) * (H + Fp)

    # 2) Sanity check of the full binning/flatten/dedup/accumulate path with a non-degenerate
    #    clamp bound (the module's literal clamp(..., 0, 0.2) collapses every bin to 0).
    result2 = empirical_bayes_distribution(input_tensor, output_tensor,
                                           bias_input, bias_output, H, Fp, K, clamp_hi=K - 1)
    result2 = jax.block_until_ready(result2)
    ref2 = _reference(np.asarray(input_tensor), np.asarray(output_tensor),
                      np.asarray(bias_input), np.asarray(bias_output), H, Fp, K, K - 1)
    np.testing.assert_allclose(np.asarray(result2), ref2, rtol=0, atol=1e-6)

    print("KERNEL_OK")
</pallas_src>

<mosaic_0001>
module attributes {stable_mosaic.version = 11 : i64} {
  func.func @_eb_kernel(%arg0: i32, %arg1: i32, %arg2: memref<128x20xf32, #tpu.memory_space<vmem>>, %arg3: memref<128x20xf32, #tpu.memory_space<vmem>>, %arg4: memref<20x4xf32, #tpu.memory_space<vmem>>, %arg5: memref<8x1024xi32, #tpu.memory_space<vmem>>) attributes {dimension_semantics = [#tpu.dimension_semantics<parallel>, #tpu.dimension_semantics<arbitrary>], iteration_bounds = array<i64: 1, 3>, scalar_prefetch = 0 : i64, scratch_operands = 0 : i64, tpu.core_type = #tpu.core_type<tc>, window_params = [{transform_indices = @transform_0, window_bounds = array<i64: 128, 20>}, {transform_indices = @transform_1, window_bounds = array<i64: 128, 20>}, {pipeline_mode = #tpu.pipeline_mode<synchronous>, transform_indices = @transform_2, window_bounds = array<i64: 20, 4>}, {transform_indices = @transform_3, window_bounds = array<i64: 8, 1024>}]} {
    %c0_i32 = arith.constant 0 : i32
    %0 = arith.cmpi eq, %arg1, %c0_i32 : i32
    %1 = arith.extui %0 : i1 to i32
    %c0_i32_0 = arith.constant 0 : i32
    %2 = arith.cmpi ne, %1, %c0_i32_0 : i32
    scf.if %2 {
      %c0_i32_2 = arith.constant 0 : i32
      %9 = vector.broadcast %c0_i32_2 : i32 to vector<8x1024xi32>
      %c0 = arith.constant 0 : index
      %c0_3 = arith.constant 0 : index
      %10 = vector.load %arg5[%c0, %c0_3] : memref<8x1024xi32, #tpu.memory_space<vmem>>, vector<8x1024xi32>
      tpu.vector_store %arg5[%c0, %c0_3], %9 {strides = array<i32>} : memref<8x1024xi32, #tpu.memory_space<vmem>>, vector<8x1024xi32>,
    } else {
    }
    %c3_i32 = arith.constant 3 : i32
    %3 = arith.muli %arg0, %c3_i32 : i32
    %4 = arith.addi %3, %arg1 : i32
    %c128_i32 = arith.constant 128 : i32
    %5 = arith.muli %4, %c128_i32 : i32
    %c300_i32 = arith.constant 300 : i32
    %6 = arith.cmpi slt, %5, %c300_i32 : i32
    %7 = arith.extui %6 : i1 to i32
    %c0_i32_1 = arith.constant 0 : i32
    %8 = arith.cmpi ne, %7, %c0_i32_1 : i32
    scf.if %8 {
      %c0 = arith.constant 0 : index
      %c0_2 = arith.constant 0 : index
      %9 = vector.load %arg2[%c0, %c0_2] : memref<128x20xf32, #tpu.memory_space<vmem>>, vector<128x20xf32>
      %c0_3 = arith.constant 0 : index
      %c0_4 = arith.constant 0 : index
      %10 = vector.load %arg3[%c0_3, %c0_4] : memref<128x20xf32, #tpu.memory_space<vmem>>, vector<128x20xf32>
      %11 = arith.addf %9, %10 : vector<128x20xf32>
      %12 = arith.fptosi %11 : vector<128x20xf32> to vector<128x20xi32>
      %c0_i32_5 = arith.constant 0 : i32
      %c0_i32_6 = arith.constant 0 : i32
      %13 = vector.broadcast %c0_i32_5 : i32 to vector<128x20xi32>
      %14 = arith.maxsi %13, %12 : vector<128x20xi32>
      %15 = vector.broadcast %c0_i32_6 : i32 to vector<128x20xi32>
      %16 = arith.minsi %15, %14 : vector<128x20xi32>
      %17 = arith.sitofp %16 : vector<128x20xi32> to vector<128x20xf32>
      %c0_7 = arith.constant 0 : index
      %c0_8 = arith.constant 0 : index
      %18 = vector.load %arg4[%c0_7, %c0_8] : memref<20x4xf32, #tpu.memory_space<vmem>>, vector<20x4xf32>
      %cst = arith.constant dense<0.000000e+00> : vector<128x4xf32>
      %19 = tpu.matmul %17, %18, %cst {dimension_numbers = #tpu.dot_dimension_numbers<[1], [0], [0], [1], [0, 0, 1, 1], [], []>} : vector<128x20xf32>, vector<20x4xf32>, vector<128x4xf32> -> vector<128x4xf32>
      %20 = arith.fptosi %19 : vector<128x4xf32> to vector<128x4xi32>
      %21 = tpu.iota {dimensions = array<i32: 0>} : vector<128x1xi32>
      %22 = vector.broadcast %5 : i32 to vector<128x1xi32>
      %23 = arith.addi %22, %21 : vector<128x1xi32>
      %c300_i32_9 = arith.constant 300 : i32
      %24 = vector.broadcast %c300_i32_9 : i32 to vector<128x1xi32>
      %25 = arith.cmpi slt, %23, %24 : vector<128x1xi32>
      %c0_i32_10 = arith.constant 0 : i32
      %c1024_i32 = arith.constant 1024 : i32
      %26 = vector.broadcast %c0_i32_10 : i32 to vector<128x1xi32>
      %27 = vector.broadcast %c1024_i32 : i32 to vector<128x1xi32>
      %28 = arith.select %25, %26, %27 : vector<128x1xi1>, vector<128x1xi32>
      %29 = vector.broadcast %28 : vector<128x1xi32> to vector<128x4xi32>
      %30 = arith.addi %20, %29 : vector<128x4xi32>
      %31 = tpu.iota {dimensions = array<i32: 1>} : vector<8x1024xi32>
      %c0_i32_11 = arith.constant 0 : i32
      %32 = vector.broadcast %c0_i32_11 : i32 to vector<8x1024xi32>
      %33 = arith.addi %31, %32 : vector<8x1024xi32>
      %c0_i32_12 = arith.constant 0 : i32
      %34 = vector.broadcast %c0_i32_12 : i32 to vector<8x1024xi32>
      %35 = vector.extract_strided_slice %30 {offsets = [0, 0], sizes = [8, 1], strides = [1, 1]} : vector<128x4xi32> to vector<8x1xi32>
      %36 = vector.broadcast %35 : vector<8x1xi32> to vector<8x1024xi32>
      %37 = arith.cmpi eq, %33, %36 : vector<8x1024xi32>
      %38 = vector.extract_strided_slice %30 {offsets = [0, 1], sizes = [8, 1], strides = [1, 1]} : vector<128x4xi32> to vector<8x1xi32>
      %39 = vector.broadcast %38 : vector<8x1xi32> to vector<8x1024xi32>
      %40 = arith.cmpi eq, %33, %39 : vector<8x1024xi32>
      %41 = arith.ori %37, %40 : vector<8x1024xi1>
      %42 = vector.extract_strided_slice %30 {offsets = [0, 2], sizes = [8, 1], strides = [1, 1]} : vector<128x4xi32> to vector<8x1xi32>
      %43 = vector.broadcast %42 : vector<8x1xi32> to vector<8x1024xi32>
      %44 = arith.cmpi eq, %33, %43 : vector<8x1024xi32>
      %45 = arith.ori %41, %44 : vector<8x1024xi1>
      %46 = vector.extract_strided_slice %30 {offsets = [0, 3], sizes = [8, 1], strides = [1, 1]} : vector<128x4xi32> to vector<8x1xi32>
      %47 = vector.broadcast %46 : vector<8x1xi32> to vector<8x1024xi32>
      %48 = arith.cmpi eq, %33, %47 : vector<8x1024xi32>
      %49 = arith.ori %45, %48 : vector<8x1024xi1>
      %50 = arith.extui %49 : vector<8x1024xi1> to vector<8x1024xi32>
      %51 = arith.addi %34, %50 : vector<8x1024xi32>
      %52 = vector.extract_strided_slice %30 {offsets = [8, 0], sizes = [8, 1], strides = [1, 1]} : vector<128x4xi32> to vector<8x1xi32>
      %53 = vector.broadcast %52 : vector<8x1xi32> to vector<8x1024xi32>
      %54 = arith.cmpi eq, %33, %53 : vector<8x1024xi32>
      %55 = vector.extract_strided_slice %30 {offsets = [8, 1], sizes = [8, 1], strides = [1, 1]} : vector<128x4xi32> to vector<8x1xi32>
      %56 = vector.broadcast %55 : vector<8x1xi32> to vector<8x1024xi32>
      %57 = arith.cmpi eq, %33, %56 : vector<8x1024xi32>
      %58 = arith.ori %54, %57 : vector<8x1024xi1>
      %59 = vector.extract_strided_slice %30 {offsets = [8, 2], sizes = [8, 1], strides = [1, 1]} : vector<128x4xi32> to vector<8x1xi32>
      %60 = vector.broadcast %59 : vector<8x1xi32> to vector<8x1024xi32>
      %61 = arith.cmpi eq, %33, %60 : vector<8x1024xi32>
      %62 = arith.ori %58, %61 : vector<8x1024xi1>
      %63 = vector.extract_strided_slice %30 {offsets = [8, 3], sizes = [8, 1], strides = [1, 1]} : vector<128x4xi32> to vector<8x1xi32>
      %64 = vector.broadcast %63 : vector<8x1xi32> to vector<8x1024xi32>
      %65 = arith.cmpi eq, %33, %64 : vector<8x1024xi32>
      %66 = arith.ori %62, %65 : vector<8x1024xi1>
      %67 = arith.extui %66 : vector<8x1024xi1> to vector<8x1024xi32>
      %68 = arith.addi %51, %67 : vector<8x1024xi32>
      %69 = vector.extract_strided_slice %30 {offsets = [16, 0], sizes = [8, 1], strides = [1, 1]} : vector<128x4xi32> to vector<8x1xi32>
      %70 = vector.broadcast %69 : vector<8x1xi32> to vector<8x1024xi32>
      %71 = arith.cmpi eq, %33, %70 : vector<8x1024xi32>
      %72 = vector.extract_strided_slice %30 {offsets = [16, 1], sizes = [8, 1], strides = [1, 1]} : vector<128x4xi32> to vector<8x1xi32>
      %73 = vector.broadcast %72 : vector<8x1xi32> to vector<8x1024xi32>
      %74 = arith.cmpi eq, %33, %73 : vector<8x1024xi32>
      %75 = arith.ori %71, %74 : vector<8x1024xi1>
      %76 = vector.extract_strided_slice %30 {offsets = [16, 2], sizes = [8, 1], strides = [1, 1]} : vector<128x4xi32> to vector<8x1xi32>
      %77 = vector.broadcast %76 : vector<8x1xi32> to vector<8x1024xi32>
      %78 = arith.cmpi eq, %33, %77 : vector<8x1024xi32>
      %79 = arith.ori %75, %78 : vector<8x1024xi1>
      %80 = vector.extract_strided_slice %30 {offsets = [16, 3], sizes = [8, 1], strides = [1, 1]} : vector<128x4xi32> to vector<8x1xi32>
      %81 = vector.broadcast %80 : vector<8x1xi32> to vector<8x1024xi32>
      %82 = arith.cmpi eq, %33, %81 : vector<8x1024xi32>
      %83 = arith.ori %79, %82 : vector<8x1024xi1>
      %84 = arith.extui %83 : vector<8x1024xi1> to vector<8x1024xi32>
      %85 = arith.addi %68, %84 : vector<8x1024xi32>
      %86 = vector.extract_strided_slice %30 {offsets = [24, 0], sizes = [8, 1], strides = [1, 1]} : vector<128x4xi32> to vector<8x1xi32>
      %87 = vector.broadcast %86 : vector<8x1xi32> to vector<8x1024xi32>
      %88 = arith.cmpi eq, %33, %87 : vector<8x1024xi32>
      %89 = vector.extract_strided_slice %30 {offsets = [24, 1], sizes = [8, 1], strides = [1, 1]} : vector<128x4xi32> to vector<8x1xi32>
      %90 = vector.broadcast %89 : vector<8x1xi32> to vector<8x1024xi32>
      %91 = arith.cmpi eq, %33, %90 : vector<8x1024xi32>
      %92 = arith.ori %88, %91 : vector<8x1024xi1>
      %93 = vector.extract_strided_slice %30 {offsets = [24, 2], sizes = [8, 1], strides = [1, 1]} : vector<128x4xi32> to vector<8x1xi32>
      %94 = vector.broadcast %93 : vector<8x1xi32> to vector<8x1024xi32>
      %95 = arith.cmpi eq, %33, %94 : vector<8x1024xi32>
      %96 = arith.ori %92, %95 : vector<8x1024xi1>
      %97 = vector.extract_strided_slice %30 {offsets = [24, 3], sizes = [8, 1], strides = [1, 1]} : vector<128x4xi32> to vector<8x1xi32>
      %98 = vector.broadcast %97 : vector<8x1xi32> to vector<8x1024xi32>
      %99 = arith.cmpi eq, %33, %98 : vector<8x1024xi32>
      %100 = arith.ori %96, %99 : vector<8x1024xi1>
      %101 = arith.extui %100 : vector<8x1024xi1> to vector<8x1024xi32>
      %102 = arith.addi %85, %101 : vector<8x1024xi32>
      %103 = vector.extract_strided_slice %30 {offsets = [32, 0], sizes = [8, 1], strides = [1, 1]} : vector<128x4xi32> to vector<8x1xi32>
      %104 = vector.broadcast %103 : vector<8x1xi32> to vector<8x1024xi32>
      %105 = arith.cmpi eq, %33, %104 : vector<8x1024xi32>
      %106 = vector.extract_strided_slice %30 {offsets = [32, 1], sizes = [8, 1], strides = [1, 1]} : vector<128x4xi32> to vector<8x1xi32>
      %107 = vector.broadcast %106 : vector<8x1xi32> to vector<8x1024xi32>
      %108 = arith.cmpi eq, %33, %107 : vector<8x1024xi32>
      %109 = arith.ori %105, %108 : vector<8x1024xi1>
      %110 = vector.extract_strided_slice %30 {offsets = [32, 2], sizes = [8, 1], strides = [1, 1]} : vector<128x4xi32> to vector<8x1xi32>
      %111 = vector.broadcast %110 : vector<8x1xi32> to vector<8x1024xi32>
      %112 = arith.cmpi eq, %33, %111 : vector<8x1024xi32>
      %113 = arith.ori %109, %112 : vector<8x1024xi1>
      %114 = vector.extract_strided_slice %30 {offsets = [32, 3], sizes = [8, 1], strides = [1, 1]} : vector<128x4xi32> to vector<8x1xi32>
      %115 = vector.broadcast %114 : vector<8x1xi32> to vector<8x1024xi32>
      %116 = arith.cmpi eq, %33, %115 : vector<8x1024xi32>
      %117 = arith.ori %113, %116 : vector<8x1024xi1>
      %118 = arith.extui %117 : vector<8x1024xi1> to vector<8x1024xi32>
      %119 = arith.addi %102, %118 : vector<8x1024xi32>
      %120 = vector.extract_strided_slice %30 {offsets = [40, 0], sizes = [8, 1], strides = [1, 1]} : vector<128x4xi32> to vector<8x1xi32>
      %121 = vector.broadcast %120 : vector<8x1xi32> to vector<8x1024xi32>
      %122 = arith.cmpi eq, %33, %121 : vector<8x1024xi32>
      %123 = vector.extract_strided_slice %30 {offsets = [40, 1], sizes = [8, 1], strides = [1, 1]} : vector<128x4xi32> to vector<8x1xi32>
      %124 = vector.broadcast %123 : vector<8x1xi32> to vector<8x1024xi32>
      %125 = arith.cmpi eq, %33, %124 : vector<8x1024xi32>
      %126 = arith.ori %122, %125 : vector<8x1024xi1>
      %127 = vector.extract_strided_slice %30 {offsets = [40, 2], sizes = [8, 1], strides = [1, 1]} : vector<128x4xi32> to vector<8x1xi32>
      %128 = vector.broadcast %127 : vector<8x1xi32> to vector<8x1024xi32>
      %129 = arith.cmpi eq, %33, %128 : vector<8x1024xi32>
      %130 = arith.ori %126, %129 : vector<8x1024xi1>
      %131 = vector.extract_strided_slice %30 {offsets = [40, 3], sizes = [8, 1], strides = [1, 1]} : vector<128x4xi32> to vector<8x1xi32>
      %132 = vector.broadcast %131 : vector<8x1xi32> to vector<8x1024xi32>
      %133 = arith.cmpi eq, %33, %132 : vector<8x1024xi32>
      %134 = arith.ori %130, %133 : vector<8x1024xi1>
      %135 = arith.extui %134 : vector<8x1024xi1> to vector<8x1024xi32>
      %136 = arith.addi %119, %135 : vector<8x1024xi32>
      %137 = vector.extract_strided_slice %30 {offsets = [48, 0], sizes = [8, 1], strides = [1, 1]} : vector<128x4xi32> to vector<8x1xi32>
      %138 = vector.broadcast %137 : vector<8x1xi32> to vector<8x1024xi32>
      %139 = arith.cmpi eq, %33, %138 : vector<8x1024xi32>
      %140 = vector.extract_strided_slice %30 {offsets = [48, 1], sizes = [8, 1], strides = [1, 1]} : vector<128x4xi32> to vector<8x1xi32>
      %141 = vector.broadcast %140 : vector<8x1xi32> to vector<8x1024xi32>
      %142 = arith.cmpi eq, %33, %141 : vector<8x1024xi32>
      %143 = arith.ori %139, %142 : vector<8x1024xi1>
      %144 = vector.extract_strided_slice %30 {offsets = [48, 2], sizes = [8, 1], strides = [1, 1]} : vector<128x4xi32> to vector<8x1xi32>
      %145 = vector.broadcast %144 : vector<8x1xi32> to vector<8x1024xi32>
      %146 = arith.cmpi eq, %33, %145 : vector<8x1024xi32>
      %147 = arith.ori %143, %146 : vector<8x1024xi1>
      %148 = vector.extract_strided_slice %30 {offsets = [48, 3], sizes = [8, 1], strides = [1, 1]} : vector<128x4xi32> to vector<8x1xi32>
      %149 = vector.broadcast %148 : vector<8x1xi32> to vector<8x1024xi32>
      %150 = arith.cmpi eq, %33, %149 : vector<8x1024xi32>
      %151 = arith.ori %147, %150 : vector<8x1024xi1>
      %152 = arith.extui %151 : vector<8x1024xi1> to vector<8x1024xi32>
      %153 = arith.addi %136, %152 : vector<8x1024xi32>
      %154 = vector.extract_strided_slice %30 {offsets = [56, 0], sizes = [8, 1], strides = [1, 1]} : vector<128x4xi32> to vector<8x1xi32>
      %155 = vector.broadcast %154 : vector<8x1xi32> to vector<8x1024xi32>
      %156 = arith.cmpi eq, %33, %155 : vector<8x1024xi32>
      %157 = vector.extract_strided_slice %30 {offsets = [56, 1], sizes = [8, 1], strides = [1, 1]} : vector<128x4xi32> to vector<8x1xi32>
      %158 = vector.broadcast %157 : vector<8x1xi32> to vector<8x1024xi32>
      %159 = arith.cmpi eq, %33, %158 : vector<8x1024xi32>
      %160 = arith.ori %156, %159 : vector<8x1024xi1>
      %161 = vector.extract_strided_slice %30 {offsets = [56, 2], sizes = [8, 1], strides = [1, 1]} : vector<128x4xi32> to vector<8x1xi32>
      %162 = vector.broadcast %161 : vector<8x1xi32> to vector<8x1024xi32>
      %163 = arith.cmpi eq, %33, %162 : vector<8x1024xi32>
      %164 = arith.ori %160, %163 : vector<8x1024xi1>
      %165 = vector.extract_strided_slice %30 {offsets = [56, 3], sizes = [8, 1], strides = [1, 1]} : vector<128x4xi32> to vector<8x1xi32>
      %166 = vector.broadcast %165 : vector<8x1xi32> to vector<8x1024xi32>
      %167 = arith.cmpi eq, %33, %166 : vector<8x1024xi32>
      %168 = arith.ori %164, %167 : vector<8x1024xi1>
      %169 = arith.extui %168 : vector<8x1024xi1> to vector<8x1024xi32>
      %170 = arith.addi %153, %169 : vector<8x1024xi32>
      %171 = vector.extract_strided_slice %30 {offsets = [64, 0], sizes = [8, 1], strides = [1, 1]} : vector<128x4xi32> to vector<8x1xi32>
      %172 = vector.broadcast %171 : vector<8x1xi32> to vector<8x1024xi32>
      %173 = arith.cmpi eq, %33, %172 : vector<8x1024xi32>
      %174 = vector.extract_strided_slice %30 {offsets = [64, 1], sizes = [8, 1], strides = [1, 1]} : vector<128x4xi32> to vector<8x1xi32>
      %175 = vector.broadcast %174 : vector<8x1xi32> to vector<8x1024xi32>
      %176 = arith.cmpi eq, %33, %175 : vector<8x1024xi32>
      %177 = arith.ori %173, %176 : vector<8x1024xi1>
      %178 = vector.extract_strided_slice %30 {offsets = [64, 2], sizes = [8, 1], strides = [1, 1]} : vector<128x4xi32> to vector<8x1xi32>
      %179 = vector.broadcast %178 : vector<8x1xi32> to vector<8x1024xi32>
      %180 = arith.cmpi eq, %33, %179 : vector<8x1024xi32>
      %181 = arith.ori %177, %180 : vector<8x1024xi1>
      %182 = vector.extract_strided_slice %30 {offsets = [64, 3], sizes = [8, 1], strides = [1, 1]} : vector<128x4xi32> to vector<8x1xi32>
      %183 = vector.broadcast %182 : vector<8x1xi32> to vector<8x1024xi32>
      %184 = arith.cmpi eq, %33, %183 : vector<8x1024xi32>
      %185 = arith.ori %181, %184 : vector<8x1024xi1>
      %186 = arith.extui %185 : vector<8x1024xi1> to vector<8x1024xi32>
      %187 = arith.addi %170, %186 : vector<8x1024xi32>
      %188 = vector.extract_strided_slice %30 {offsets = [72, 0], sizes = [8, 1], strides = [1, 1]} : vector<128x4xi32> to vector<8x1xi32>
      %189 = vector.broadcast %188 : vector<8x1xi32> to vector<8x1024xi32>
      %190 = arith.cmpi eq, %33, %189 : vector<8x1024xi32>
      %191 = vector.extract_strided_slice %30 {offsets = [72, 1], sizes = [8, 1], strides = [1, 1]} : vector<128x4xi32> to vector<8x1xi32>
      %192 = vector.broadcast %191 : vector<8x1xi32> to vector<8x1024xi32>
      %193 = arith.cmpi eq, %33, %192 : vector<8x1024xi32>
      %194 = arith.ori %190, %193 : vector<8x1024xi1>
      %195 = vector.extract_strided_slice %30 {offsets = [72, 2], sizes = [8, 1], strides = [1, 1]} : vector<128x4xi32> to vector<8x1xi32>
      %196 = vector.broadcast %195 : vector<8x1xi32> to vector<8x1024xi32>
      %197 = arith.cmpi eq, %33, %196 : vector<8x1024xi32>
      %198 = arith.ori %194, %197 : vector<8x1024xi1>
      %199 = vector.extract_strided_slice %30 {offsets = [72, 3], sizes = [8, 1], strides = [1, 1]} : vector<128x4xi32> to vector<8x1xi32>
      %200 = vector.broadcast %199 : vector<8x1xi32> to vector<8x1024xi32>
      %201 = arith.cmpi eq, %33, %200 : vector<8x1024xi32>
      %202 = arith.ori %198, %201 : vector<8x1024xi1>
      %203 = arith.extui %202 : vector<8x1024xi1> to vector<8x1024xi32>
      %204 = arith.addi %187, %203 : vector<8x1024xi32>
      %205 = vector.extract_strided_slice %30 {offsets = [80, 0], sizes = [8, 1], strides = [1, 1]} : vector<128x4xi32> to vector<8x1xi32>
      %206 = vector.broadcast %205 : vector<8x1xi32> to vector<8x1024xi32>
      %207 = arith.cmpi eq, %33, %206 : vector<8x1024xi32>
      %208 = vector.extract_strided_slice %30 {offsets = [80, 1], sizes = [8, 1], strides = [1, 1]} : vector<128x4xi32> to vector<8x1xi32>
      %209 = vector.broadcast %208 : vector<8x1xi32> to vector<8x1024xi32>
      %210 = arith.cmpi eq, %33, %209 : vector<8x1024xi32>
      %211 = arith.ori %207, %210 : vector<8x1024xi1>
      %212 = vector.extract_strided_slice %30 {offsets = [80, 2], sizes = [8, 1], strides = [1, 1]} : vector<128x4xi32> to vector<8x1xi32>
      %213 = vector.broadcast %212 : vector<8x1xi32> to vector<8x1024xi32>
      %214 = arith.cmpi eq, %33, %213 : vector<8x1024xi32>
      %215 = arith.ori %211, %214 : vector<8x1024xi1>
      %216 = vector.extract_strided_slice %30 {offsets = [80, 3], sizes = [8, 1], strides = [1, 1]} : vector<128x4xi32> to vector<8x1xi32>
      %217 = vector.broadcast %216 : vector<8x1xi32> to vector<8x1024xi32>
      %218 = arith.cmpi eq, %33, %217 : vector<8x1024xi32>
      %219 = arith.ori %215, %218 : vector<8x1024xi1>
      %220 = arith.extui %219 : vector<8x1024xi1> to vector<8x1024xi32>
      %221 = arith.addi %204, %220 : vector<8x1024xi32>
      %222 = vector.extract_strided_slice %30 {offsets = [88, 0], sizes = [8, 1], strides = [1, 1]} : vector<128x4xi32> to vector<8x1xi32>
      %223 = vector.broadcast %222 : vector<8x1xi32> to vector<8x1024xi32>
      %224 = arith.cmpi eq, %33, %223 : vector<8x1024xi32>
      %225 = vector.extract_strided_slice %30 {offsets = [88, 1], sizes = [8, 1], strides = [1, 1]} : vector<128x4xi32> to vector<8x1xi32>
      %226 = vector.broadcast %225 : vector<8x1xi32> to vector<8x1024xi32>
      %227 = arith.cmpi eq, %33, %226 : vector<8x1024xi32>
      %228 = arith.ori %224, %227 : vector<8x1024xi1>
      %229 = vector.extract_strided_slice %30 {offsets = [88, 2], sizes = [8, 1], strides = [1, 1]} : vector<128x4xi32> to vector<8x1xi32>
      %230 = vector.broadcast %229 : vector<8x1xi32> to vector<8x1024xi32>
      %231 = arith.cmpi eq, %33, %230 : vector<8x1024xi32>
      %232 = arith.ori %228, %231 : vector<8x1024xi1>
      %233 = vector.extract_strided_slice %30 {offsets = [88, 3], sizes = [8, 1], strides = [1, 1]} : vector<128x4xi32> to vector<8x1xi32>
      %234 = vector.broadcast %233 : vector<8x1xi32> to vector<8x1024xi32>
      %235 = arith.cmpi eq, %33, %234 : vector<8x1024xi32>
      %236 = arith.ori %232, %235 : vector<8x1024xi1>
      %237 = arith.extui %236 : vector<8x1024xi1> to vector<8x1024xi32>
      %238 = arith.addi %221, %237 : vector<8x1024xi32>
      %239 = vector.extract_strided_slice %30 {offsets = [96, 0], sizes = [8, 1], strides = [1, 1]} : vector<128x4xi32> to vector<8x1xi32>
      %240 = vector.broadcast %239 : vector<8x1xi32> to vector<8x1024xi32>
      %241 = arith.cmpi eq, %33, %240 : vector<8x1024xi32>
      %242 = vector.extract_strided_slice %30 {offsets = [96, 1], sizes = [8, 1], strides = [1, 1]} : vector<128x4xi32> to vector<8x1xi32>
      %243 = vector.broadcast %242 : vector<8x1xi32> to vector<8x1024xi32>
      %244 = arith.cmpi eq, %33, %243 : vector<8x1024xi32>
      %245 = arith.ori %241, %244 : vector<8x1024xi1>
      %246 = vector.extract_strided_slice %30 {offsets = [96, 2], sizes = [8, 1], strides = [1, 1]} : vector<128x4xi32> to vector<8x1xi32>
      %247 = vector.broadcast %246 : vector<8x1xi32> to vector<8x1024xi32>
      %248 = arith.cmpi eq, %33, %247 : vector<8x1024xi32>
      %249 = arith.ori %245, %248 : vector<8x1024xi1>
      %250 = vector.extract_strided_slice %30 {offsets = [96, 3], sizes = [8, 1], strides = [1, 1]} : vector<128x4xi32> to vector<8x1xi32>
      %251 = vector.broadcast %250 : vector<8x1xi32> to vector<8x1024xi32>
      %252 = arith.cmpi eq, %33, %251 : vector<8x1024xi32>
      %253 = arith.ori %249, %252 : vector<8x1024xi1>
      %254 = arith.extui %253 : vector<8x1024xi1> to vector<8x1024xi32>
      %255 = arith.addi %238, %254 : vector<8x1024xi32>
      %256 = vector.extract_strided_slice %30 {offsets = [104, 0], sizes = [8, 1], strides = [1, 1]} : vector<128x4xi32> to vector<8x1xi32>
      %257 = vector.broadcast %256 : vector<8x1xi32> to vector<8x1024xi32>
      %258 = arith.cmpi eq, %33, %257 : vector<8x1024xi32>
      %259 = vector.extract_strided_slice %30 {offsets = [104, 1], sizes = [8, 1], strides = [1, 1]} : vector<128x4xi32> to vector<8x1xi32>
      %260 = vector.broadcast %259 : vector<8x1xi32> to vector<8x1024xi32>
      %261 = arith.cmpi eq, %33, %260 : vector<8x1024xi32>
      %262 = arith.ori %258, %261 : vector<8x1024xi1>
      %263 = vector.extract_strided_slice %30 {offsets = [104, 2], sizes = [8, 1], strides = [1, 1]} : vector<128x4xi32> to vector<8x1xi32>
      %264 = vector.broadcast %263 : vector<8x1xi32> to vector<8x1024xi32>
      %265 = arith.cmpi eq, %33, %264 : vector<8x1024xi32>
      %266 = arith.ori %262, %265 : vector<8x1024xi1>
      %267 = vector.extract_strided_slice %30 {offsets = [104, 3], sizes = [8, 1], strides = [1, 1]} : vector<128x4xi32> to vector<8x1xi32>
      %268 = vector.broadcast %267 : vector<8x1xi32> to vector<8x1024xi32>
      %269 = arith.cmpi eq, %33, %268 : vector<8x1024xi32>
      %270 = arith.ori %266, %269 : vector<8x1024xi1>
      %271 = arith.extui %270 : vector<8x1024xi1> to vector<8x1024xi32>
      %272 = arith.addi %255, %271 : vector<8x1024xi32>
      %273 = vector.extract_strided_slice %30 {offsets = [112, 0], sizes = [8, 1], strides = [1, 1]} : vector<128x4xi32> to vector<8x1xi32>
      %274 = vector.broadcast %273 : vector<8x1xi32> to vector<8x1024xi32>
      %275 = arith.cmpi eq, %33, %274 : vector<8x1024xi32>
      %276 = vector.extract_strided_slice %30 {offsets = [112, 1], sizes = [8, 1], strides = [1, 1]} : vector<128x4xi32> to vector<8x1xi32>
      %277 = vector.broadcast %276 : vector<8x1xi32> to vector<8x1024xi32>
      %278 = arith.cmpi eq, %33, %277 : vector<8x1024xi32>
      %279 = arith.ori %275, %278 : vector<8x1024xi1>
      %280 = vector.extract_strided_slice %30 {offsets = [112, 2], sizes = [8, 1], strides = [1, 1]} : vector<128x4xi32> to vector<8x1xi32>
      %281 = vector.broadcast %280 : vector<8x1xi32> to vector<8x1024xi32>
      %282 = arith.cmpi eq, %33, %281 : vector<8x1024xi32>
      %283 = arith.ori %279, %282 : vector<8x1024xi1>
      %284 = vector.extract_strided_slice %30 {offsets = [112, 3], sizes = [8, 1], strides = [1, 1]} : vector<128x4xi32> to vector<8x1xi32>
      %285 = vector.broadcast %284 : vector<8x1xi32> to vector<8x1024xi32>
      %286 = arith.cmpi eq, %33, %285 : vector<8x1024xi32>
      %287 = arith.ori %283, %286 : vector<8x1024xi1>
      %288 = arith.extui %287 : vector<8x1024xi1> to vector<8x1024xi32>
      %289 = arith.addi %272, %288 : vector<8x1024xi32>
      %290 = vector.extract_strided_slice %30 {offsets = [120, 0], sizes = [8, 1], strides = [1, 1]} : vector<128x4xi32> to vector<8x1xi32>
      %291 = vector.broadcast %290 : vector<8x1xi32> to vector<8x1024xi32>
      %292 = arith.cmpi eq, %33, %291 : vector<8x1024xi32>
      %293 = vector.extract_strided_slice %30 {offsets = [120, 1], sizes = [8, 1], strides = [1, 1]} : vector<128x4xi32> to vector<8x1xi32>
      %294 = vector.broadcast %293 : vector<8x1xi32> to vector<8x1024xi32>
      %295 = arith.cmpi eq, %33, %294 : vector<8x1024xi32>
      %296 = arith.ori %292, %295 : vector<8x1024xi1>
      %297 = vector.extract_strided_slice %30 {offsets = [120, 2], sizes = [8, 1], strides = [1, 1]} : vector<128x4xi32> to vector<8x1xi32>
      %298 = vector.broadcast %297 : vector<8x1xi32> to vector<8x1024xi32>
      %299 = arith.cmpi eq, %33, %298 : vector<8x1024xi32>
      %300 = arith.ori %296, %299 : vector<8x1024xi1>
      %301 = vector.extract_strided_slice %30 {offsets = [120, 3], sizes = [8, 1], strides = [1, 1]} : vector<128x4xi32> to vector<8x1xi32>
      %302 = vector.broadcast %301 : vector<8x1xi32> to vector<8x1024xi32>
      %303 = arith.cmpi eq, %33, %302 : vector<8x1024xi32>
      %304 = arith.ori %300, %303 : vector<8x1024xi1>
      %305 = arith.extui %304 : vector<8x1024xi1> to vector<8x1024xi32>
      %306 = arith.addi %289, %305 : vector<8x1024xi32>
      %c0_13 = arith.constant 0 : index
      %c0_14 = arith.constant 0 : index
      %307 = vector.load %arg5[%c0_13, %c0_14] : memref<8x1024xi32, #tpu.memory_space<vmem>>, vector<8x1024xi32>
      %308 = arith.addi %307, %306 : vector<8x1024xi32>
      %c0_15 = arith.constant 0 : index
      %c0_16 = arith.constant 0 : index
      %309 = vector.load %arg5[%c0_15, %c0_16] : memref<8x1024xi32, #tpu.memory_space<vmem>>, vector<8x1024xi32>
      tpu.vector_store %arg5[%c0_15, %c0_16], %308 {strides = array<i32>} : memref<8x1024xi32, #tpu.memory_space<vmem>>, vector<8x1024xi32>,
    } else {
    }
    return
  }
  func.func @transform_0(%arg0: i32, %arg1: i32) -> (i32, i32) {
    %c3_i32 = arith.constant 3 : i32
    %0 = arith.muli %arg0, %c3_i32 : i32
    %1 = arith.addi %0, %arg1 : i32
    %c0_i32 = arith.constant 0 : i32
    %c0_i32_0 = arith.constant 0 : i32
    return %1, %c0_i32 : i32, i32
  }
  func.func @transform_1(%arg0: i32, %arg1: i32) -> (i32, i32) {
    %c3_i32 = arith.constant 3 : i32
    %0 = arith.muli %arg0, %c3_i32 : i32
    %1 = arith.addi %0, %arg1 : i32
    %c0_i32 = arith.constant 0 : i32
    %c0_i32_0 = arith.constant 0 : i32
    return %1, %c0_i32 : i32, i32
  }
  func.func @transform_2(%arg0: i32, %arg1: i32) -> (i32, i32) {
    %c0_i32 = arith.constant 0 : i32
    %c0_i32_0 = arith.constant 0 : i32
    %c0_i32_1 = arith.constant 0 : i32
    return %c0_i32, %c0_i32_0 : i32, i32
  }
  func.func @transform_3(%arg0: i32, %arg1: i32) -> (i32, i32) {
    %c0_i32 = arith.constant 0 : i32
    %c0_i32_0 = arith.constant 0 : i32
    return %arg0, %c0_i32 : i32, i32
  }
}

</mosaic_0001>

<llo_original>
// kernel: tpu_custom_call.1
$region0: #{tpu_custom_call.1}
  #allocation0 [shape = 'u32[]', space=smem, size = 0x4, offset = 0x4, fixed_abs, tag = 'smem constant byte address 0x4 - core index']
  #allocation1 [shape = 'u32[72,128]{1,0:T(1,128)}', space=vmem, size = 0x9000, scoped, tag = 'internal scratch']
  %s0 = inlined_call_operand.vmem [shape: f32[384,20], index: 0, kind: input, shape index: {}]
  %s1 = inlined_call_operand.vmem [shape: f32[384,20], index: 1, kind: input, shape index: {}]
  %s2 = inlined_call_operand.vmem [shape: f32[20,4], index: 2, kind: input, shape index: {}]
  %s3 = inlined_call_operand.hbm [shape: s32[8,1024], index: 3, kind: output, shape index: {}]
  %s4 = sld [smem:[#allocation0]]
  $region53: #{tpu_custom_call.1} parent=0
    _
  %s6 = ssub.s32 1, %s4
  %s7 = scalar_select 0, %s6, %s4
  $region1: #{tpu_custom_call.1} parent=0
    #allocation2 [shape = 'u8[32768]{0}', space=vmem, size = 0x8000, scoped, tag = 'output window, operand 0, single buffered']
    #allocation3 [shape = 's32[2]{0}', space=sflag, size = 0x8, scoped, tag = 'scoped memory for tpu_custom_call.1']
    %8 = vsyncpa [#allocation3], 0
    loop: start=0, step=1, limit=5
    $region2: #{tpu_custom_call.1} parent=1 // loop_pre_header
      _
    $region3: #{tpu_custom_call.1} parent=1 // loop_header
      %s10 = sphi 0, %s14
      %p11 = scmp.ge.s32.totalorder %s10, 5
      %s17 = sphi 0, %s29
      %s18 = sphi 0, %s25
      %s19 = sphi 0, %s17
      %s20 = sphi 0, %s18
      %s21 = sphi 0, %s19
      %s22 = sphi 0, %s20
      %s36 = sphi 0, %s38
      %s39 = sphi 0, %s36
      %s40 = sphi 0, %s39
      %s56 = sphi 0, %s40
      %s66 = sphi 0, %s68
      %s69 = sphi 0, %s66
      %s70 = sphi 0, %s69
      %s86 = sphi 0, %s70
      %s90 = sphi 0, %s90
      %s92 = sphi 0, %s90
      %s93 = sphi 0, %s92
      %s107 = sphi 0, %s93
      %s113 = sphi 0, %s115
      %s116 = sphi 0, %s113
      %s117 = sphi 0, %s116
      %s133 = sphi 0, %s117
    $region4: #{tpu_custom_call.1} parent=1 // loop_header_branch
      %13 = sbr.rel (%p11) target = $region8
    $region5: #{tpu_custom_call.1} parent=1 // loop_body
      %s15 = ssub.s32 %s10, 1
      %s16 = ssub.s32 %s10, 2
      %s23 = sadd.s32 1, %s18
      %p24 = scmp.ge.s32.totalorder %s23, 3
      %s25 = scalar_select %p24, 0, %s23
      %s26 = sadd.s32 1, %s17
      %s27 = scalar_select %p24, %s26, %s17
      %p28 = scmp.ge.s32.totalorder %s27, 1
      %s29 = scalar_select %p28, 0, %s27
      %s30 = smul.u32 %s17, 3
      %s31 = sadd.s32 %s30, %s18
      %s32 = smul.u32 %s29, 3
      %s33 = sadd.s32 %s32, %s25
      %s34 = ssub.s32 %s31, %s33
      %p35 = scmp.eq.s32.totalorder %s34, 0
      %s37 = sadd.s32 %s36, 1
      %s38 = scalar_select %p35, %s36, %s37
      %p41 = pneg %p35
      %p42 = scmp.eq.s32.totalorder %s10, 2
      %p43 = por %p41, %p42
      %p44 = scmp.ne.s32.totalorder %s36, %s39
      %p45 = scmp.eq.s32.totalorder %s10, 0
      %p46 = por %p44, %p45
      %p47 = scmp.ne.s32.totalorder %s36, %s39
      %p48 = scmp.eq.s32.totalorder %s15, 2
      %p49 = por %p47, %p48
      %p50 = scmp.ne.s32.totalorder %s39, %s40
      %p51 = scmp.eq.s32.totalorder %s15, 0
      %p52 = por %p50, %p51
      %p53 = scmp.ne.s32.totalorder %s39, %s40
      %p54 = scmp.eq.s32.totalorder %s16, 2
      %p55 = por %p53, %p54
      %p57 = scmp.ne.s32.totalorder %s40, %s56
      %p58 = scmp.eq.s32.totalorder %s16, 0
      %p59 = por %p57, %p58
      %s60 = smul.u32 %s17, 3
      %s61 = sadd.s32 %s60, %s18
      %s62 = smul.u32 %s29, 3
      %s63 = sadd.s32 %s62, %s25
      %s64 = ssub.s32 %s61, %s63
      %p65 = scmp.eq.s32.totalorder %s64, 0
      %s67 = sadd.s32 %s66, 1
      %s68 = scalar_select %p65, %s66, %s67
      %p71 = pneg %p65
      %p72 = scmp.eq.s32.totalorder %s10, 2
      %p73 = por %p71, %p72
      %p74 = scmp.ne.s32.totalorder %s66, %s69
      %p75 = scmp.eq.s32.totalorder %s10, 0
      %p76 = por %p74, %p75
      %p77 = scmp.ne.s32.totalorder %s66, %s69
      %p78 = scmp.eq.s32.totalorder %s15, 2
      %p79 = por %p77, %p78
      %p80 = scmp.ne.s32.totalorder %s69, %s70
      %p81 = scmp.eq.s32.totalorder %s15, 0
      %p82 = por %p80, %p81
      %p83 = scmp.ne.s32.totalorder %s69, %s70
      %p84 = scmp.eq.s32.totalorder %s16, 2
      %p85 = por %p83, %p84
      %p87 = scmp.ne.s32.totalorder %s70, %s86
      %p88 = scmp.eq.s32.totalorder %s16, 0
      %p89 = por %p87, %p88
      %s91 = sadd.s32 %s90, 1
      %p94 = scmp.eq.s32.totalorder %s10, 2
      %p95 = scmp.ne.s32.totalorder %s90, %s92
      %p96 = scmp.eq.s32.totalorder %s10, 0
      %p97 = por %p95, %p96
      %p98 = scmp.ne.s32.totalorder %s90, %s92
      %p99 = scmp.eq.s32.totalorder %s15, 2
      %p100 = por %p98, %p99
      %p101 = scmp.ne.s32.totalorder %s92, %s93
      %p102 = scmp.eq.s32.totalorder %s15, 0
      %p103 = por %p101, %p102
      %p104 = scmp.ne.s32.totalorder %s92, %s93
      %p105 = scmp.eq.s32.totalorder %s16, 2
      %p106 = por %p104, %p105
      %p108 = scmp.ne.s32.totalorder %s93, %s107
      %p109 = scmp.eq.s32.totalorder %s16, 0
      %p110 = por %p108, %p109
      %s111 = ssub.s32 %s17, %s29
      %p112 = scmp.eq.s32.totalorder %s111, 0
      %s114 = sadd.s32 %s113, 1
      %s115 = scalar_select %p112, %s113, %s114
      %p118 = pneg %p112
      %p119 = scmp.eq.s32.totalorder %s10, 2
      %p120 = por %p118, %p119
      %p121 = scmp.ne.s32.totalorder %s113, %s116
      %p122 = scmp.eq.s32.totalorder %s10, 0
      %p123 = por %p121, %p122
      %p124 = scmp.ne.s32.totalorder %s113, %s116
      %p125 = scmp.eq.s32.totalorder %s15, 2
      %p126 = por %p124, %p125
      %p127 = scmp.ne.s32.totalorder %s116, %s117
      %p128 = scmp.eq.s32.totalorder %s15, 0
      %p129 = por %p127, %p128
      %p130 = scmp.ne.s32.totalorder %s116, %s117
      %p131 = scmp.eq.s32.totalorder %s16, 2
      %p132 = por %p130, %p131
      %p134 = scmp.ne.s32.totalorder %s117, %s133
      %p135 = scmp.eq.s32.totalorder %s16, 0
      %p136 = por %p134, %p135
      %p137 = scmp.le.s32.totalorder 1, %s10
      %p138 = scmp.lt.s32.totalorder %s10, 4
      %p139 = pnand %p137, %p138
      %p140 = pneg %p139
      // Predicated region
      $region9: #{tpu_custom_call.1} parent=5 // pred_check
        _
      $region10: #{tpu_custom_call.1} parent=5 // pred_check_branch
        %142 = sbr.rel (%p139) target = $region12
      $region11: #{tpu_custom_call.1} parent=5 // pred_region
        %s143 = ssub.s32 %s10, 1
        // Predicated region
        $region13: #{tpu_custom_call.1} parent=11 // pred_check
          %p144 = pneg %p103
        $region14: #{tpu_custom_call.1} parent=11 // pred_check_branch
          %146 = sbr.rel (%p144) target = $region16
        $region15: #{tpu_custom_call.1} parent=11 // pred_region
          _
        $region16: #{tpu_custom_call.1} parent=11 // pred_fallthru
          _
      $region12: #{tpu_custom_call.1} parent=5 // pred_fallthru
        _
      %p147 = scmp.lt.s32.totalorder %s10, 3
      // Predicated region
      $region17: #{tpu_custom_call.1} parent=5 // pred_check
        %p148 = pneg %p147
      $region18: #{tpu_custom_call.1} parent=5 // pred_check_branch
        %150 = sbr.rel (%p148) target = $region20
      $region19: #{tpu_custom_call.1} parent=5 // pred_region
        // Predicated region
        $region21: #{tpu_custom_call.1} parent=19 // pred_check
          %p151 = pneg %p46
        $region22: #{tpu_custom_call.1} parent=19 // pred_check_branch
          %153 = sbr.rel (%p151) target = $region24
        $region23: #{tpu_custom_call.1} parent=19 // pred_region
          %s154 = smul.u32 %s17, 3
          %s155 = sadd.s32 %s154, %s18
          %s156 = smul.u32 16, %s155
          %p157 = scmp.lt.s32.totalorder %s156, 47
          %s158 = scalar_select %p157, %s156, 47
          %s159 = smul.addr %s158, 8
          %s160 = scalar_lea.vmem %s0, %s159
          %s161 = smul.u32 %s17, 3
          %s162 = sadd.s32 %s161, %s18
          %s163 = smul.u32 16, %s162
        $region24: #{tpu_custom_call.1} parent=19 // pred_fallthru
          _
        // Predicated region
        $region25: #{tpu_custom_call.1} parent=19 // pred_check
          %p164 = pneg %p76
        $region26: #{tpu_custom_call.1} parent=19 // pred_check_branch
          %166 = sbr.rel (%p164) target = $region28
        $region27: #{tpu_custom_call.1} parent=19 // pred_region
          %s167 = smul.u32 %s17, 3
          %s168 = sadd.s32 %s167, %s18
          %s169 = smul.u32 16, %s168
          %p170 = scmp.lt.s32.totalorder %s169, 47
          %s171 = scalar_select %p170, %s169, 47
          %s172 = smul.addr %s171, 8
          %s173 = scalar_lea.vmem %s1, %s172
          %s174 = smul.u32 %s17, 3
          %s175 = sadd.s32 %s174, %s18
          %s176 = smul.u32 16, %s175
        $region28: #{tpu_custom_call.1} parent=19 // pred_fallthru
          _
      $region20: #{tpu_custom_call.1} parent=5 // pred_fallthru
        _
      %p177 = scmp.le.s32.totalorder 1, %s10
      %p178 = scmp.lt.s32.totalorder %s10, 4
      %p179 = pnand %p177, %p178
      %p180 = pneg %p179
      // Predicated region
      $region29: #{tpu_custom_call.1} parent=5 // pred_check
        _
      $region30: #{tpu_custom_call.1} parent=5 // pred_check_branch
        %182 = sbr.rel (%p179) target = $region32
      $region31: #{tpu_custom_call.1} parent=5 // pred_region
        %s183 = ssub.s32 %s10, 1
        %s184 = smul.u32 %s19, 3
        %s185 = sadd.s32 %s184, %s20
        %s186 = smul.u32 16, %s185
        %p187 = scmp.lt.s32.totalorder %s186, 47
        %s188 = scalar_select %p187, %s186, 47
        %s189 = smul.addr %s188, 8
        %s190 = scalar_lea.vmem %s0, %s189
        %p191 = pneg %p52
        %p192 = pneg %p49
        %s193 = smul.u32 %s19, 3
        %s194 = sadd.s32 %s193, %s20
        %s195 = smul.u32 16, %s194
        %p196 = scmp.lt.s32.totalorder %s195, 47
        %s197 = scalar_select %p196, %s195, 47
        %s198 = smul.addr %s197, 8
        %s199 = scalar_lea.vmem %s1, %s198
        %p200 = pneg %p82
        %p201 = pneg %p79
        %p202 = pneg %p103
        %p203 = pneg %p100
        %p204 = pneg %p129
        %p205 = pneg %p126
        %s206 = smul.u32 %s19, 3
        %s207 = sadd.s32 %s206, %s20
        %s208 = smul.u32 16, %s207
        %p209 = scmp.lt.s32.totalorder %s208, 47
        %s210 = scalar_select %p209, %s208, 47
        %s211 = smul.addr %s210, 8
        %s212 = scalar_lea.vmem %s0, %s211
        %s213 = smul.u32 %s19, 3
        %s214 = sadd.s32 %s213, %s20
        %s215 = smul.u32 16, %s214
        %s216 = smul.u32 %s19, 3
        %s217 = sadd.s32 %s216, %s20
        %s218 = smul.u32 16, %s217
        %p219 = scmp.lt.s32.totalorder %s218, 47
        %s220 = scalar_select %p219, %s218, 47
        %s221 = smul.addr %s220, 8
        %s222 = scalar_lea.vmem %s1, %s221
        %s223 = smul.u32 %s19, 3
        %s224 = sadd.s32 %s223, %s20
        %s225 = smul.u32 16, %s224
        %p226 = scmp.eq.s32.totalorder %s20, 0
        // Predicated region
        $region33: #{tpu_custom_call.1} parent=31 // pred_check
          %p227 = pneg %p226
        $region34: #{tpu_custom_call.1} parent=31 // pred_check_branch
          %229 = sbr.rel (%p227) target = $region36
        $region35: #{tpu_custom_call.1} parent=31 // pred_region
          %230 = vst [vmem:[#allocation2] sm:$0xff] 0
          %231 = vst [vmem:[#allocation2 + $0x8] sm:$0xff] 0
          %232 = vst [vmem:[#allocation2 + $0x10] sm:$0xff] 0
          %233 = vst [vmem:[#allocation2 + $0x18] sm:$0xff] 0
          %234 = vst [vmem:[#allocation2 + $0x20] sm:$0xff] 0
          %235 = vst [vmem:[#allocation2 + $0x28] sm:$0xff] 0
          %236 = vst [vmem:[#allocation2 + $0x30] sm:$0xff] 0
          %237 = vst [vmem:[#allocation2 + $0x38] sm:$0xff] 0
        $region36: #{tpu_custom_call.1} parent=31 // pred_fallthru
          _
        %s238 = smul.u32 %s19, 3
        %s239 = sadd.s32 %s238, %s20
        %s240 = smul.u32 %s239, 128
        %p241 = scmp.lt.s32.totalorder %s240, 300
        // Predicated region
        $region37: #{tpu_custom_call.1} parent=31 // pred_check
          %p242 = pneg %p241
        $region38: #{tpu_custom_call.1} parent=31 // pred_check_branch
          %244 = sbr.rel (%p242) target = $region40
        $region39: #{tpu_custom_call.1} parent=31 // pred_region
          %v245 = vld [vmem:[%s212] sm:$0xff]
          %v246 = vld [vmem:[%s212 + $0x8] sm:$0xff]
          %v247 = vld [vmem:[%s212 + $0x10] sm:$0xff]
          %v248 = vld [vmem:[%s212 + $0x18] sm:$0xff]
          %v249 = vld [vmem:[%s212 + $0x20] sm:$0xff]
          %v250 = vld [vmem:[%s212 + $0x28] sm:$0xff]
          %v251 = vld [vmem:[%s212 + $0x30] sm:$0xff]
          %v252 = vld [vmem:[%s212 + $0x38] sm:$0xff]
          %v253 = vld [vmem:[%s212 + $0x40] sm:$0xff]
          %v254 = vld [vmem:[%s212 + $0x48] sm:$0xff]
          %v255 = vld [vmem:[%s212 + $0x50] sm:$0xff]
          %v256 = vld [vmem:[%s212 + $0x58] sm:$0xff]
          %v257 = vld [vmem:[%s212 + $0x60] sm:$0xff]
          %v258 = vld [vmem:[%s212 + $0x68] sm:$0xff]
          %v259 = vld [vmem:[%s212 + $0x70] sm:$0xff]
          %v260 = vld [vmem:[%s212 + $0x78] sm:$0xff]
          %v261 = vld [vmem:[%s222] sm:$0xff]
          %v262 = vld [vmem:[%s222 + $0x8] sm:$0xff]
          %v263 = vld [vmem:[%s222 + $0x10] sm:$0xff]
          %v264 = vld [vmem:[%s222 + $0x18] sm:$0xff]
          %v265 = vld [vmem:[%s222 + $0x20] sm:$0xff]
          %v266 = vld [vmem:[%s222 + $0x28] sm:$0xff]
          %v267 = vld [vmem:[%s222 + $0x30] sm:$0xff]
          %v268 = vld [vmem:[%s222 + $0x38] sm:$0xff]
          %v269 = vld [vmem:[%s222 + $0x40] sm:$0xff]
          %v270 = vld [vmem:[%s222 + $0x48] sm:$0xff]
          %v271 = vld [vmem:[%s222 + $0x50] sm:$0xff]
          %v272 = vld [vmem:[%s222 + $0x58] sm:$0xff]
          %v273 = vld [vmem:[%s222 + $0x60] sm:$0xff]
          %v274 = vld [vmem:[%s222 + $0x68] sm:$0xff]
          %v275 = vld [vmem:[%s222 + $0x70] sm:$0xff]
          %v276 = vld [vmem:[%s222 + $0x78] sm:$0xff]
          %v277 = vadd.f32 %v245, %v261
          %v278 = vadd.f32 %v246, %v262
          %v279 = vadd.f32 %v247, %v263
          %v280 = vadd.f32 %v248, %v264
          %v281 = vadd.f32 %v249, %v265
          %v282 = vadd.f32 %v250, %v266
          %v283 = vadd.f32 %v251, %v267
          %v284 = vadd.f32 %v252, %v268
          %v285 = vadd.f32 %v253, %v269
          %v286 = vadd.f32 %v254, %v270
          %v287 = vadd.f32 %v255, %v271
          %v288 = vadd.f32 %v256, %v272
          %v289 = vadd.f32 %v257, %v273
          %v290 = vadd.f32 %v258, %v274
          %v291 = vadd.f32 %v259, %v275
          %v292 = vadd.f32 %v260, %v276
          %v293 = vcvt.f32.s32.to.zero.pseudo %v277
          %v294 = vcvt.f32.s32.to.zero.pseudo %v278
          %v295 = vcvt.f32.s32.to.zero.pseudo %v279
          %v296 = vcvt.f32.s32.to.zero.pseudo %v280
          %v297 = vcvt.f32.s32.to.zero.pseudo %v281
          %v298 = vcvt.f32.s32.to.zero.pseudo %v282
          %v299 = vcvt.f32.s32.to.zero.pseudo %v283
          %v300 = vcvt.f32.s32.to.zero.pseudo %v284
          %v301 = vcvt.f32.s32.to.zero.pseudo %v285
          %v302 = vcvt.f32.s32.to.zero.pseudo %v286
          %v303 = vcvt.f32.s32.to.zero.pseudo %v287
          %v304 = vcvt.f32.s32.to.zero.pseudo %v288
          %v305 = vcvt.f32.s32.to.zero.pseudo %v289
          %v306 = vcvt.f32.s32.to.zero.pseudo %v290
          %v307 = vcvt.f32.s32.to.zero.pseudo %v291
          %v308 = vcvt.f32.s32.to.zero.pseudo %v292
          %vm309 = vcmp.gt.s32.totalorder %v293, 0
          %v310 = vsel %vm309, %v293, 0
          %vm311 = vcmp.gt.s32.totalorder %v294, 0
          %v312 = vsel %vm311, %v294, 0
          %vm313 = vcmp.gt.s32.totalorder %v295, 0
          %v314 = vsel %vm313, %v295, 0
          %vm315 = vcmp.gt.s32.totalorder %v296, 0
          %v316 = vsel %vm315, %v296, 0
          %vm317 = vcmp.gt.s32.totalorder %v297, 0
          %v318 = vsel %vm317, %v297, 0
          %vm319 = vcmp.gt.s32.totalorder %v298, 0
          %v320 = vsel %vm319, %v298, 0
          %vm321 = vcmp.gt.s32.totalorder %v299, 0
          %v322 = vsel %vm321, %v299, 0
          %vm323 = vcmp.gt.s32.totalorder %v300, 0
          %v324 = vsel %vm323, %v300, 0
          %vm325 = vcmp.gt.s32.totalorder %v301, 0
          %v326 = vsel %vm325, %v301, 0
          %vm327 = vcmp.gt.s32.totalorder %v302, 0
          %v328 = vsel %vm327, %v302, 0
          %vm329 = vcmp.gt.s32.totalorder %v303, 0
          %v330 = vsel %vm329, %v303, 0
          %vm331 = vcmp.gt.s32.totalorder %v304, 0
          %v332 = vsel %vm331, %v304, 0
          %vm333 = vcmp.gt.s32.totalorder %v305, 0
          %v334 = vsel %vm333, %v305, 0
          %vm335 = vcmp.gt.s32.totalorder %v306, 0
          %v336 = vsel %vm335, %v306, 0
          %vm337 = vcmp.gt.s32.totalorder %v307, 0
          %v338 = vsel %vm337, %v307, 0
          %vm339 = vcmp.gt.s32.totalorder %v308, 0
          %v340 = vsel %vm339, %v308, 0
          %vm341 = vcmp.lt.s32.totalorder %v310, 0
          %v342 = vsel %vm341, %v310, 0
          %vm343 = vcmp.lt.s32.totalorder %v312, 0
          %v344 = vsel %vm343, %v312, 0
          %vm345 = vcmp.lt.s32.totalorder %v314, 0
          %v346 = vsel %vm345, %v314, 0
          %vm347 = vcmp.lt.s32.totalorder %v316, 0
          %v348 = vsel %vm347, %v316, 0
          %vm349 = vcmp.lt.s32.totalorder %v318, 0
          %v350 = vsel %vm349, %v318, 0
          %vm351 = vcmp.lt.s32.totalorder %v320, 0
          %v352 = vsel %vm351, %v320, 0
          %vm353 = vcmp.lt.s32.totalorder %v322, 0
          %v354 = vsel %vm353, %v322, 0
          %vm355 = vcmp.lt.s32.totalorder %v324, 0
          %v356 = vsel %vm355, %v324, 0
          %vm357 = vcmp.lt.s32.totalorder %v326, 0
          %v358 = vsel %vm357, %v326, 0
          %vm359 = vcmp.lt.s32.totalorder %v328, 0
          %v360 = vsel %vm359, %v328, 0
          %vm361 = vcmp.lt.s32.totalorder %v330, 0
          %v362 = vsel %vm361, %v330, 0
          %vm363 = vcmp.lt.s32.totalorder %v332, 0
          %v364 = vsel %vm363, %v332, 0
          %vm365 = vcmp.lt.s32.totalorder %v334, 0
          %v366 = vsel %vm365, %v334, 0
          %vm367 = vcmp.lt.s32.totalorder %v336, 0
          %v368 = vsel %vm367, %v336, 0
          %vm369 = vcmp.lt.s32.totalorder %v338, 0
          %v370 = vsel %vm369, %v338, 0
          %vm371 = vcmp.lt.s32.totalorder %v340, 0
          %v372 = vsel %vm371, %v340, 0
          %v373 = vcvt.s32.f32 %v342
          %v374 = vcvt.s32.f32 %v344
          %v375 = vcvt.s32.f32 %v346
          %v376 = vcvt.s32.f32 %v348
          %v377 = vcvt.s32.f32 %v350
          %v378 = vcvt.s32.f32 %v352
          %v379 = vcvt.s32.f32 %v354
          %v380 = vcvt.s32.f32 %v356
          %v381 = vcvt.s32.f32 %v358
          %v382 = vcvt.s32.f32 %v360
          %v383 = vcvt.s32.f32 %v362
          %v384 = vcvt.s32.f32 %v364
          %v385 = vcvt.s32.f32 %v366
          %v386 = vcvt.s32.f32 %v368
          %v387 = vcvt.s32.f32 %v370
          %v388 = vcvt.s32.f32 %v372
          %v389 = vld [vmem:[%s2] sm:$0xff]
          %v390 = vld [vmem:[%s2 + $0x8] sm:$0xff]
          %v391 = vld [vmem:[%s2 + $0x10] sm:$0xf]
          %vm392 = vcmask 162816
          %v394 = vsel %vm392, %v373, 0
          %v397 = vsel %vm392, %v374, 0
          %v400 = vsel %vm392, %v375, 0
          %v403 = vsel %vm392, %v376, 0
          %v406 = vsel %vm392, %v377, 0
          %v409 = vsel %vm392, %v378, 0
          %v412 = vsel %vm392, %v379, 0
          %v415 = vsel %vm392, %v380, 0
          %v418 = vsel %vm392, %v381, 0
          %v421 = vsel %vm392, %v382, 0
          %v424 = vsel %vm392, %v383, 0
          %v427 = vsel %vm392, %v384, 0
          %v430 = vsel %vm392, %v385, 0
          %v433 = vsel %vm392, %v386, 0
          %v436 = vsel %vm392, %v387, 0
          %v439 = vsel %vm392, %v388, 0
          %vm441 = vcmask 1043456
          %v443 = vsel %vm441, %v391, 0
          %445 = vmatpush.msra.mxu0 0.0
          %446 = vmatpush.msra.mxu0 0.0
          %447 = vmatpush.msra.mxu0 0.0
          %448 = vmatpush.msra.mxu0 0.0
          %449 = vmatpush.msra.mxu0 0.0
          %450 = vmatpush.msra.mxu0 0.0
          %451 = vmatpush.msra.mxu0 0.0
          %452 = vmatpush.msra.mxu0 0.0
          %453 = vmatpush.msra.mxu0 0.0
          %454 = vmatpush.msra.mxu0 0.0
          %455 = vmatpush.msra.mxu0 0.0
          %456 = vmatpush.msra.mxu0 0.0
          %457 = vmatpush.msra.mxu0 0.0
          %458 = vmatpush.msra.mxu0 %v443
          %459 = vmatpush.msra.mxu0 %v390
          %460 = vmatpush.msra.mxu0 %v389
          %461 = vmatmul.f32.gmra.mxu0 %v394
          %v462 = vpop.f32.mrf.mxu0
          %v463 = vadd.f32 0.0, %v462
          %464 = vmatmul.f32.gmra.mxu0 %v397
          %v465 = vpop.f32.mrf.mxu0
          %v466 = vadd.f32 0.0, %v465
          %467 = vmatmul.f32.gmra.mxu0 %v400
          %v468 = vpop.f32.mrf.mxu0
          %v469 = vadd.f32 0.0, %v468
          %470 = vmatmul.f32.gmra.mxu0 %v403
          %v471 = vpop.f32.mrf.mxu0
          %v472 = vadd.f32 0.0, %v471
          %473 = vmatmul.f32.gmra.mxu0 %v406
          %v474 = vpop.f32.mrf.mxu0
          %v475 = vadd.f32 0.0, %v474
          %476 = vmatmul.f32.gmra.mxu0 %v409
          %v477 = vpop.f32.mrf.mxu0
          %v478 = vadd.f32 0.0, %v477
          %479 = vmatmul.f32.gmra.mxu0 %v412
          %v480 = vpop.f32.mrf.mxu0
          %v481 = vadd.f32 0.0, %v480
          %482 = vmatmul.f32.gmra.mxu0 %v415
          %v483 = vpop.f32.mrf.mxu0
          %v484 = vadd.f32 0.0, %v483
          %485 = vmatmul.f32.gmra.mxu0 %v418
          %v486 = vpop.f32.mrf.mxu0
          %v487 = vadd.f32 0.0, %v486
          %488 = vmatmul.f32.gmra.mxu0 %v421
          %v489 = vpop.f32.mrf.mxu0
          %v490 = vadd.f32 0.0, %v489
          %491 = vmatmul.f32.gmra.mxu0 %v424
          %v492 = vpop.f32.mrf.mxu0
          %v493 = vadd.f32 0.0, %v492
          %494 = vmatmul.f32.gmra.mxu0 %v427
          %v495 = vpop.f32.mrf.mxu0
          %v496 = vadd.f32 0.0, %v495
          %497 = vmatmul.f32.gmra.mxu0 %v430
          %v498 = vpop.f32.mrf.mxu0
          %v499 = vadd.f32 0.0, %v498
          %500 = vmatmul.f32.gmra.mxu0 %v433
          %v501 = vpop.f32.mrf.mxu0
          %v502 = vadd.f32 0.0, %v501
          %503 = vmatmul.f32.gmra.mxu0 %v436
          %v504 = vpop.f32.mrf.mxu0
          %v505 = vadd.f32 0.0, %v504
          %506 = vmatmul.f32.gmra.mxu0 %v439
          %v507 = vpop.f32.mrf.mxu0
          %v508 = vadd.f32 0.0, %v507
          %509 = vdwg.mxu0
          %v510 = vcvt.f32.s32.to.zero.pseudo %v463
          %v511 = vcvt.f32.s32.to.zero.pseudo %v466
          %v512 = vcvt.f32.s32.to.zero.pseudo %v469
          %v513 = vcvt.f32.s32.to.zero.pseudo %v472
          %v514 = vcvt.f32.s32.to.zero.pseudo %v475
          %v515 = vcvt.f32.s32.to.zero.pseudo %v478
          %v516 = vcvt.f32.s32.to.zero.pseudo %v481
          %v517 = vcvt.f32.s32.to.zero.pseudo %v484
          %v518 = vcvt.f32.s32.to.zero.pseudo %v487
          %v519 = vcvt.f32.s32.to.zero.pseudo %v490
          %v520 = vcvt.f32.s32.to.zero.pseudo %v493
          %v521 = vcvt.f32.s32.to.zero.pseudo %v496
          %v522 = vcvt.f32.s32.to.zero.pseudo %v499
          %v523 = vcvt.f32.s32.to.zero.pseudo %v502
          %v524 = vcvt.f32.s32.to.zero.pseudo %v505
          %v525 = vcvt.f32.s32.to.zero.pseudo %v508
          %v526 = vlaneseq
          %v527 = vshrl.u32 %v526, 7
          %v528 = vadd.s32 %v527, 8
          %v529 = vadd.s32 %v527, 16
          %v530 = vadd.s32 %v527, 24
          %v531 = vadd.s32 %v527, 32
          %v532 = vadd.s32 %v527, 40
          %v533 = vadd.s32 %v527, 48
          %v534 = vadd.s32 %v527, 56
          %v535 = vadd.s32 %v527, 64
          %v536 = vadd.s32 %v527, 72
          %v537 = vadd.s32 %v527, 80
          %v538 = vadd.s32 %v527, 88
          %v539 = vadd.s32 %v527, 96
          %v540 = vadd.s32 %v527, 104
          %v541 = vadd.s32 %v527, 112
          %v542 = vadd.s32 %v527, 120
          %v543 = vstv %s240
          %v544 = vadd.s32 %v543, %v527
          %v545 = vadd.s32 %v543, %v528
          %v546 = vadd.s32 %v543, %v529
          %v547 = vadd.s32 %v543, %v530
          %v548 = vadd.s32 %v543, %v531
          %v549 = vadd.s32 %v543, %v532
          %v550 = vadd.s32 %v543, %v533
          %v551 = vadd.s32 %v543, %v534
          %v552 = vadd.s32 %v543, %v535
          %v553 = vadd.s32 %v543, %v536
          %v554 = vadd.s32 %v543, %v537
          %v555 = vadd.s32 %v543, %v538
          %v556 = vadd.s32 %v543, %v539
          %v557 = vadd.s32 %v543, %v540
          %v558 = vadd.s32 %v543, %v541
          %v559 = vadd.s32 %v543, %v542
          %vm560 = vcmp.lt.s32.totalorder %v544, 300
          %vm561 = vcmp.lt.s32.totalorder %v545, 300
          %vm562 = vcmp.lt.s32.totalorder %v546, 300
          %vm563 = vcmp.lt.s32.totalorder %v547, 300
          %vm564 = vcmp.lt.s32.totalorder %v548, 300
          %vm565 = vcmp.lt.s32.totalorder %v549, 300
          %vm566 = vcmp.lt.s32.totalorder %v550, 300
          %vm567 = vcmp.lt.s32.totalorder %v551, 300
          %vm568 = vcmp.lt.s32.totalorder %v552, 300
          %vm569 = vcmp.lt.s32.totalorder %v553, 300
          %vm570 = vcmp.lt.s32.totalorder %v554, 300
          %vm571 = vcmp.lt.s32.totalorder %v555, 300
          %vm572 = vcmp.lt.s32.totalorder %v556, 300
          %vm573 = vcmp.lt.s32.totalorder %v557, 300
          %vm574 = vcmp.lt.s32.totalorder %v558, 300
          %vm575 = vcmp.lt.s32.totalorder %v559, 300
          %v576 = vsel %vm560, 0, 1024
          %v577 = vsel %vm561, 0, 1024
          %v578 = vsel %vm562, 0, 1024
          %v579 = vsel %vm563, 0, 1024
          %v580 = vsel %vm564, 0, 1024
          %v581 = vsel %vm565, 0, 1024
          %v582 = vsel %vm566, 0, 1024
          %v583 = vsel %vm567, 0, 1024
          %v584 = vsel %vm568, 0, 1024
          %v585 = vsel %vm569, 0, 1024
          %v586 = vsel %vm570, 0, 1024
          %v587 = vsel %vm571, 0, 1024
          %v588 = vsel %vm572, 0, 1024
          %v589 = vsel %vm573, 0, 1024
          %v590 = vsel %vm574, 0, 1024
          %v591 = vsel %vm575, 0, 1024
          %v592 = vadd.s32 %v510, %v576
          %v593 = vadd.s32 %v511, %v577
          %v594 = vadd.s32 %v512, %v578
          %v595 = vadd.s32 %v513, %v579
          %v596 = vadd.s32 %v514, %v580
          %v597 = vadd.s32 %v515, %v581
          %v598 = vadd.s32 %v516, %v582
          %v599 = vadd.s32 %v517, %v583
          %v600 = vadd.s32 %v518, %v584
          %v601 = vadd.s32 %v519, %v585
          %v602 = vadd.s32 %v520, %v586
          %v603 = vadd.s32 %v521, %v587
          %v604 = vadd.s32 %v522, %v588
          %v605 = vadd.s32 %v523, %v589
          %v606 = vadd.s32 %v524, %v590
          %v607 = vadd.s32 %v525, %v591
          %v608 = vlaneseq
          %v609 = vand.u32 %v608, 127
          %v610 = vadd.s32 %v609, 128
          %v611 = vadd.s32 %v609, 256
          %v612 = vadd.s32 %v609, 384
          %v613 = vadd.s32 %v609, 512
          %v614 = vadd.s32 %v609, 640
          %v615 = vadd.s32 %v609, 768
          %v616 = vadd.s32 %v609, 896
          %617 = vset.pattern.permute.xlu0 0
          %618 = vperm.xlu0 %617, %v592
          %v619 = vpop.permute.xlu0 %618
          %vm620 = vcmp.eq.s32.totalorder %v609, %v619
          %vm621 = vcmp.eq.s32.totalorder %v610, %v619
          %vm622 = vcmp.eq.s32.totalorder %v611, %v619
          %vm623 = vcmp.eq.s32.totalorder %v612, %v619
          %vm624 = vcmp.eq.s32.totalorder %v613, %v619
          %vm625 = vcmp.eq.s32.totalorder %v614, %v619
          %vm626 = vcmp.eq.s32.totalorder %v615, %v619
          %vm627 = vcmp.eq.s32.totalorder %v616, %v619
          %628 = vset.pattern.permute.xlu0 1
          %629 = vperm.xlu0 %628, %v592
          %v630 = vpop.permute.xlu0 %629
          %vm631 = vcmp.eq.s32.totalorder %v609, %v630
          %vm632 = vcmp.eq.s32.totalorder %v610, %v630
          %vm633 = vcmp.eq.s32.totalorder %v611, %v630
          %vm634 = vcmp.eq.s32.totalorder %v612, %v630
          %vm635 = vcmp.eq.s32.totalorder %v613, %v630
          %vm636 = vcmp.eq.s32.totalorder %v614, %v630
          %vm637 = vcmp.eq.s32.totalorder %v615, %v630
          %vm638 = vcmp.eq.s32.totalorder %v616, %v630
          %vm639 = vmor %vm620, %vm631
          %vm640 = vmor %vm621, %vm632
          %vm641 = vmor %vm622, %vm633
          %vm642 = vmor %vm623, %vm634
          %vm643 = vmor %vm624, %vm635
          %vm644 = vmor %vm625, %vm636
          %vm645 = vmor %vm626, %vm637
          %vm646 = vmor %vm627, %vm638
          %647 = vset.pattern.permute.xlu0 2
          %648 = vperm.xlu0 %647, %v592
          %v649 = vpop.permute.xlu0 %648
          %vm650 = vcmp.eq.s32.totalorder %v609, %v649
          %vm651 = vcmp.eq.s32.totalorder %v610, %v649
          %vm652 = vcmp.eq.s32.totalorder %v611, %v649
          %vm653 = vcmp.eq.s32.totalorder %v612, %v649
          %vm654 = vcmp.eq.s32.totalorder %v613, %v649
          %vm655 = vcmp.eq.s32.totalorder %v614, %v649
          %vm656 = vcmp.eq.s32.totalorder %v615, %v649
          %vm657 = vcmp.eq.s32.totalorder %v616, %v649
          %vm658 = vmor %vm639, %vm650
          %vm659 = vmor %vm640, %vm651
          %vm660 = vmor %vm641, %vm652
          %vm661 = vmor %vm642, %vm653
          %vm662 = vmor %vm643, %vm654
          %vm663 = vmor %vm644, %vm655
          %vm664 = vmor %vm645, %vm656
          %vm665 = vmor %vm646, %vm657
          %666 = vset.pattern.permute.xlu0 3
          %667 = vperm.xlu0 %666, %v592
          %v668 = vpop.permute.xlu0 %667
          %vm669 = vcmp.eq.s32.totalorder %v609, %v668
          %vm670 = vcmp.eq.s32.totalorder %v610, %v668
          %vm671 = vcmp.eq.s32.totalorder %v611, %v668
          %vm672 = vcmp.eq.s32.totalorder %v612, %v668
          %vm673 = vcmp.eq.s32.totalorder %v613, %v668
          %vm674 = vcmp.eq.s32.totalorder %v614, %v668
          %vm675 = vcmp.eq.s32.totalorder %v615, %v668
          %vm676 = vcmp.eq.s32.totalorder %v616, %v668
          %vm677 = vmor %vm658, %vm669
          %vm678 = vmor %vm659, %vm670
          %vm679 = vmor %vm660, %vm671
          %vm680 = vmor %vm661, %vm672
          %vm681 = vmor %vm662, %vm673
          %vm682 = vmor %vm663, %vm674
          %vm683 = vmor %vm664, %vm675
          %vm684 = vmor %vm665, %vm676
          %v685 = vsel %vm677, 1, 0
          %v686 = vsel %vm678, 1, 0
          %v687 = vsel %vm679, 1, 0
          %v688 = vsel %vm680, 1, 0
          %v689 = vsel %vm681, 1, 0
          %v690 = vsel %vm682, 1, 0
          %v691 = vsel %vm683, 1, 0
          %v692 = vsel %vm684, 1, 0
          %693 = vset.pattern.permute.xlu0 0
          %694 = vperm.xlu0 %693, %v593
          %v695 = vpop.permute.xlu0 %694
          %vm696 = vcmp.eq.s32.totalorder %v609, %v695
          %vm697 = vcmp.eq.s32.totalorder %v610, %v695
          %vm698 = vcmp.eq.s32.totalorder %v611, %v695
          %vm699 = vcmp.eq.s32.totalorder %v612, %v695
          %vm700 = vcmp.eq.s32.totalorder %v613, %v695
          %vm701 = vcmp.eq.s32.totalorder %v614, %v695
          %vm702 = vcmp.eq.s32.totalorder %v615, %v695
          %vm703 = vcmp.eq.s32.totalorder %v616, %v695
          %704 = vset.pattern.permute.xlu0 1
          %705 = vperm.xlu0 %704, %v593
          %v706 = vpop.permute.xlu0 %705
          %vm707 = vcmp.eq.s32.totalorder %v609, %v706
          %vm708 = vcmp.eq.s32.totalorder %v610, %v706
          %vm709 = vcmp.eq.s32.totalorder %v611, %v706
          %vm710 = vcmp.eq.s32.totalorder %v612, %v706
          %vm711 = vcmp.eq.s32.totalorder %v613, %v706
          %vm712 = vcmp.eq.s32.totalorder %v614, %v706
          %vm713 = vcmp.eq.s32.totalorder %v615, %v706
          %vm714 = vcmp.eq.s32.totalorder %v616, %v706
          %vm715 = vmor %vm696, %vm707
          %vm716 = vmor %vm697, %vm708
          %vm717 = vmor %vm698, %vm709
          %vm718 = vmor %vm699, %vm710
          %vm719 = vmor %vm700, %vm711
          %vm720 = vmor %vm701, %vm712
          %vm721 = vmor %vm702, %vm713
          %vm722 = vmor %vm703, %vm714
          %723 = vset.pattern.permute.xlu0 2
          %724 = vperm.xlu0 %723, %v593
          %v725 = vpop.permute.xlu0 %724
          %vm726 = vcmp.eq.s32.totalorder %v609, %v725
          %vm727 = vcmp.eq.s32.totalorder %v610, %v725
          %vm728 = vcmp.eq.s32.totalorder %v611, %v725
          %vm729 = vcmp.eq.s32.totalorder %v612, %v725
          %vm730 = vcmp.eq.s32.totalorder %v613, %v725
          %vm731 = vcmp.eq.s32.totalorder %v614, %v725
          %vm732 = vcmp.eq.s32.totalorder %v615, %v725
          %vm733 = vcmp.eq.s32.totalorder %v616, %v725
          %vm734 = vmor %vm715, %vm726
          %vm735 = vmor %vm716, %vm727
          %vm736 = vmor %vm717, %vm728
          %vm737 = vmor %vm718, %vm729
          %vm738 = vmor %vm719, %vm730
          %vm739 = vmor %vm720, %vm731
          %vm740 = vmor %vm721, %vm732
          %vm741 = vmor %vm722, %vm733
          %742 = vset.pattern.permute.xlu0 3
          %743 = vperm.xlu0 %742, %v593
          %v744 = vpop.permute.xlu0 %743
          %vm745 = vcmp.eq.s32.totalorder %v609, %v744
          %vm746 = vcmp.eq.s32.totalorder %v610, %v744
          %vm747 = vcmp.eq.s32.totalorder %v611, %v744
          %vm748 = vcmp.eq.s32.totalorder %v612, %v744
          %vm749 = vcmp.eq.s32.totalorder %v613, %v744
          %vm750 = vcmp.eq.s32.totalorder %v614, %v744
          %vm751 = vcmp.eq.s32.totalorder %v615, %v744
          %vm752 = vcmp.eq.s32.totalorder %v616, %v744
          %vm753 = vmor %vm734, %vm745
          %vm754 = vmor %vm735, %vm746
          %vm755 = vmor %vm736, %vm747
          %vm756 = vmor %vm737, %vm748
          %vm757 = vmor %vm738, %vm749
          %vm758 = vmor %vm739, %vm750
          %vm759 = vmor %vm740, %vm751
          %vm760 = vmor %vm741, %vm752
          %v761 = vsel %vm753, 1, 0
          %v762 = vsel %vm754, 1, 0
          %v763 = vsel %vm755, 1, 0
          %v764 = vsel %vm756, 1, 0
          %v765 = vsel %vm757, 1, 0
          %v766 = vsel %vm758, 1, 0
          %v767 = vsel %vm759, 1, 0
          %v768 = vsel %vm760, 1, 0
          %v769 = vadd.s32 %v685, %v761
          %v770 = vadd.s32 %v686, %v762
          %v771 = vadd.s32 %v687, %v763
          %v772 = vadd.s32 %v688, %v764
          %v773 = vadd.s32 %v689, %v765
          %v774 = vadd.s32 %v690, %v766
          %v775 = vadd.s32 %v691, %v767
          %v776 = vadd.s32 %v692, %v768
          %777 = vset.pattern.permute.xlu0 0
          %778 = vperm.xlu0 %777, %v594
          %v779 = vpop.permute.xlu0 %778
          %vm780 = vcmp.eq.s32.totalorder %v609, %v779
          %vm781 = vcmp.eq.s32.totalorder %v610, %v779
          %vm782 = vcmp.eq.s32.totalorder %v611, %v779
          %vm783 = vcmp.eq.s32.totalorder %v612, %v779
          %vm784 = vcmp.eq.s32.totalorder %v613, %v779
          %vm785 = vcmp.eq.s32.totalorder %v614, %v779
          %vm786 = vcmp.eq.s32.totalorder %v615, %v779
          %vm787 = vcmp.eq.s32.totalorder %v616, %v779
          %788 = vset.pattern.permute.xlu0 1
          %789 = vperm.xlu0 %788, %v594
          %v790 = vpop.permute.xlu0 %789
          %vm791 = vcmp.eq.s32.totalorder %v609, %v790
          %vm792 = vcmp.eq.s32.totalorder %v610, %v790
          %vm793 = vcmp.eq.s32.totalorder %v611, %v790
          %vm794 = vcmp.eq.s32.totalorder %v612, %v790
          %vm795 = vcmp.eq.s32.totalorder %v613, %v790
          %vm796 = vcmp.eq.s32.totalorder %v614, %v790
          %vm797 = vcmp.eq.s32.totalorder %v615, %v790
          %vm798 = vcmp.eq.s32.totalorder %v616, %v790
          %vm799 = vmor %vm780, %vm791
          %vm800 = vmor %vm781, %vm792
          %vm801 = vmor %vm782, %vm793
          %vm802 = vmor %vm783, %vm794
          %vm803 = vmor %vm784, %vm795
          %vm804 = vmor %vm785, %vm796
          %vm805 = vmor %vm786, %vm797
          %vm806 = vmor %vm787, %vm798
          %807 = vset.pattern.permute.xlu0 2
          %808 = vperm.xlu0 %807, %v594
          %v809 = vpop.permute.xlu0 %808
          %vm810 = vcmp.eq.s32.totalorder %v609, %v809
          %vm811 = vcmp.eq.s32.totalorder %v610, %v809
          %vm812 = vcmp.eq.s32.totalorder %v611, %v809
          %vm813 = vcmp.eq.s32.totalorder %v612, %v809
          %vm814 = vcmp.eq.s32.totalorder %v613, %v809
          %vm815 = vcmp.eq.s32.totalorder %v614, %v809
          %vm816 = vcmp.eq.s32.totalorder %v615, %v809
          %vm817 = vcmp.eq.s32.totalorder %v616, %v809
          %vm818 = vmor %vm799, %vm810
          %vm819 = vmor %vm800, %vm811
          %vm820 = vmor %vm801, %vm812
          %vm821 = vmor %vm802, %vm813
          %vm822 = vmor %vm803, %vm814
          %vm823 = vmor %vm804, %vm815
          %vm824 = vmor %vm805, %vm816
          %vm825 = vmor %vm806, %vm817
          %826 = vset.pattern.permute.xlu0 3
          %827 = vperm.xlu0 %826, %v594
          %v828 = vpop.permute.xlu0 %827
          %vm829 = vcmp.eq.s32.totalorder %v609, %v828
          %vm830 = vcmp.eq.s32.totalorder %v610, %v828
          %vm831 = vcmp.eq.s32.totalorder %v611, %v828
          %vm832 = vcmp.eq.s32.totalorder %v612, %v828
          %vm833 = vcmp.eq.s32.totalorder %v613, %v828
          %vm834 = vcmp.eq.s32.totalorder %v614, %v828
          %vm835 = vcmp.eq.s32.totalorder %v615, %v828
          %vm836 = vcmp.eq.s32.totalorder %v616, %v828
          %vm837 = vmor %vm818, %vm829
          %vm838 = vmor %vm819, %vm830
          %vm839 = vmor %vm820, %vm831
          %vm840 = vmor %vm821, %vm832
          %vm841 = vmor %vm822, %vm833
          %vm842 = vmor %vm823, %vm834
          %vm843 = vmor %vm824, %vm835
          %vm844 = vmor %vm825, %vm836
          %v845 = vsel %vm837, 1, 0
          %v846 = vsel %vm838, 1, 0
          %v847 = vsel %vm839, 1, 0
          %v848 = vsel %vm840, 1, 0
          %v849 = vsel %vm841, 1, 0
          %v850 = vsel %vm842, 1, 0
          %v851 = vsel %vm843, 1, 0
          %v852 = vsel %vm844, 1, 0
          %v853 = vadd.s32 %v769, %v845
          %v854 = vadd.s32 %v770, %v846
          %v855 = vadd.s32 %v771, %v847
          %v856 = vadd.s32 %v772, %v848
          %v857 = vadd.s32 %v773, %v849
          %v858 = vadd.s32 %v774, %v850
          %v859 = vadd.s32 %v775, %v851
          %v860 = vadd.s32 %v776, %v852
          %861 = vset.pattern.permute.xlu0 0
          %862 = vperm.xlu0 %861, %v595
          %v863 = vpop.permute.xlu0 %862
          %vm864 = vcmp.eq.s32.totalorder %v609, %v863
          %vm865 = vcmp.eq.s32.totalorder %v610, %v863
          %vm866 = vcmp.eq.s32.totalorder %v611, %v863
          %vm867 = vcmp.eq.s32.totalorder %v612, %v863
          %vm868 = vcmp.eq.s32.totalorder %v613, %v863
          %vm869 = vcmp.eq.s32.totalorder %v614, %v863
          %vm870 = vcmp.eq.s32.totalorder %v615, %v863
          %vm871 = vcmp.eq.s32.totalorder %v616, %v863
          %872 = vset.pattern.permute.xlu0 1
          %873 = vperm.xlu0 %872, %v595
          %v874 = vpop.permute.xlu0 %873
          %vm875 = vcmp.eq.s32.totalorder %v609, %v874
          %vm876 = vcmp.eq.s32.totalorder %v610, %v874
          %vm877 = vcmp.eq.s32.totalorder %v611, %v874
          %vm878 = vcmp.eq.s32.totalorder %v612, %v874
          %vm879 = vcmp.eq.s32.totalorder %v613, %v874
          %vm880 = vcmp.eq.s32.totalorder %v614, %v874
          %vm881 = vcmp.eq.s32.totalorder %v615, %v874
          %vm882 = vcmp.eq.s32.totalorder %v616, %v874
          %vm883 = vmor %vm864, %vm875
          %vm884 = vmor %vm865, %vm876
          %vm885 = vmor %vm866, %vm877
          %vm886 = vmor %vm867, %vm878
          %vm887 = vmor %vm868, %vm879
          %vm888 = vmor %vm869, %vm880
          %vm889 = vmor %vm870, %vm881
          %vm890 = vmor %vm871, %vm882
          %891 = vset.pattern.permute.xlu0 2
          %892 = vperm.xlu0 %891, %v595
          %v893 = vpop.permute.xlu0 %892
          %vm894 = vcmp.eq.s32.totalorder %v609, %v893
          %vm895 = vcmp.eq.s32.totalorder %v610, %v893
          %vm896 = vcmp.eq.s32.totalorder %v611, %v893
          %vm897 = vcmp.eq.s32.totalorder %v612, %v893
          %vm898 = vcmp.eq.s32.totalorder %v613, %v893
          %vm899 = vcmp.eq.s32.totalorder %v614, %v893
          %vm900 = vcmp.eq.s32.totalorder %v615, %v893
          %vm901 = vcmp.eq.s32.totalorder %v616, %v893
          %vm902 = vmor %vm883, %vm894
          %vm903 = vmor %vm884, %vm895
          %vm904 = vmor %vm885, %vm896
          %vm905 = vmor %vm886, %vm897
          %vm906 = vmor %vm887, %vm898
          %vm907 = vmor %vm888, %vm899
          %vm908 = vmor %vm889, %vm900
          %vm909 = vmor %vm890, %vm901
          %910 = vset.pattern.permute.xlu0 3
          %911 = vperm.xlu0 %910, %v595
          %v912 = vpop.permute.xlu0 %911
          %vm913 = vcmp.eq.s32.totalorder %v609, %v912
          %vm914 = vcmp.eq.s32.totalorder %v610, %v912
          %vm915 = vcmp.eq.s32.totalorder %v611, %v912
          %vm916 = vcmp.eq.s32.totalorder %v612, %v912
          %vm917 = vcmp.eq.s32.totalorder %v613, %v912
          %vm918 = vcmp.eq.s32.totalorder %v614, %v912
          %vm919 = vcmp.eq.s32.totalorder %v615, %v912
          %vm920 = vcmp.eq.s32.totalorder %v616, %v912
          %vm921 = vmor %vm902, %vm913
          %vm922 = vmor %vm903, %vm914
          %vm923 = vmor %vm904, %vm915
          %vm924 = vmor %vm905, %vm916
          %vm925 = vmor %vm906, %vm917
          %vm926 = vmor %vm907, %vm918
          %vm927 = vmor %vm908, %vm919
          %vm928 = vmor %vm909, %vm920
          %v929 = vsel %vm921, 1, 0
          %v930 = vsel %vm922, 1, 0
          %v931 = vsel %vm923, 1, 0
          %v932 = vsel %vm924, 1, 0
          %v933 = vsel %vm925, 1, 0
          %v934 = vsel %vm926, 1, 0
          %v935 = vsel %vm927, 1, 0
          %v936 = vsel %vm928, 1, 0
          %v937 = vadd.s32 %v853, %v929
          %v938 = vadd.s32 %v854, %v930
          %v939 = vadd.s32 %v855, %v931
          %v940 = vadd.s32 %v856, %v932
          %v941 = vadd.s32 %v857, %v933
          %v942 = vadd.s32 %v858, %v934
          %v943 = vadd.s32 %v859, %v935
          %v944 = vadd.s32 %v860, %v936
          %945 = vset.pattern.permute.xlu0 0
          %946 = vperm.xlu0 %945, %v596
          %v947 = vpop.permute.xlu0 %946
          %vm948 = vcmp.eq.s32.totalorder %v609, %v947
          %vm949 = vcmp.eq.s32.totalorder %v610, %v947
          %vm950 = vcmp.eq.s32.totalorder %v611, %v947
          %vm951 = vcmp.eq.s32.totalorder %v612, %v947
          %vm952 = vcmp.eq.s32.totalorder %v613, %v947
          %vm953 = vcmp.eq.s32.totalorder %v614, %v947
          %vm954 = vcmp.eq.s32.totalorder %v615, %v947
          %vm955 = vcmp.eq.s32.totalorder %v616, %v947
          %956 = vset.pattern.permute.xlu0 1
          %957 = vperm.xlu0 %956, %v596
          %v958 = vpop.permute.xlu0 %957
          %vm959 = vcmp.eq.s32.totalorder %v609, %v958
          %vm960 = vcmp.eq.s32.totalorder %v610, %v958
          %vm961 = vcmp.eq.s32.totalorder %v611, %v958
          %vm962 = vcmp.eq.s32.totalorder %v612, %v958
          %vm963 = vcmp.eq.s32.totalorder %v613, %v958
          %vm964 = vcmp.eq.s32.totalorder %v614, %v958
          %vm965 = vcmp.eq.s32.totalorder %v615, %v958
          %vm966 = vcmp.eq.s32.totalorder %v616, %v958
          %vm967 = vmor %vm948, %vm959
          %vm968 = vmor %vm949, %vm960
          %vm969 = vmor %vm950, %vm961
          %vm970 = vmor %vm951, %vm962
          %vm971 = vmor %vm952, %vm963
          %vm972 = vmor %vm953, %vm964
          %vm973 = vmor %vm954, %vm965
          %vm974 = vmor %vm955, %vm966
          %975 = vset.pattern.permute.xlu0 2
          %976 = vperm.xlu0 %975, %v596
          %v977 = vpop.permute.xlu0 %976
          %vm978 = vcmp.eq.s32.totalorder %v609, %v977
          %vm979 = vcmp.eq.s32.totalorder %v610, %v977
          %vm980 = vcmp.eq.s32.totalorder %v611, %v977
          %vm981 = vcmp.eq.s32.totalorder %v612, %v977
          %vm982 = vcmp.eq.s32.totalorder %v613, %v977
          %vm983 = vcmp.eq.s32.totalorder %v614, %v977
          %vm984 = vcmp.eq.s32.totalorder %v615, %v977
          %vm985 = vcmp.eq.s32.totalorder %v616, %v977
          %vm986 = vmor %vm967, %vm978
          %vm987 = vmor %vm968, %vm979
          %vm988 = vmor %vm969, %vm980
          %vm989 = vmor %vm970, %vm981
          %vm990 = vmor %vm971, %vm982
          %vm991 = vmor %vm972, %vm983
          %vm992 = vmor %vm973, %vm984
          %vm993 = vmor %vm974, %vm985
          %994 = vset.pattern.permute.xlu0 3
          %995 = vperm.xlu0 %994, %v596
          %v996 = vpop.permute.xlu0 %995
          %vm997 = vcmp.eq.s32.totalorder %v609, %v996
          %vm998 = vcmp.eq.s32.totalorder %v610, %v996
          %vm999 = vcmp.eq.s32.totalorder %v611, %v996
          %vm1000 = vcmp.eq.s32.totalorder %v612, %v996
          %vm1001 = vcmp.eq.s32.totalorder %v613, %v996
          %vm1002 = vcmp.eq.s32.totalorder %v614, %v996
          %vm1003 = vcmp.eq.s32.totalorder %v615, %v996
          %vm1004 = vcmp.eq.s32.totalorder %v616, %v996
          %vm1005 = vmor %vm986, %vm997
          %vm1006 = vmor %vm987, %vm998
          %vm1007 = vmor %vm988, %vm999
          %vm1008 = vmor %vm989, %vm1000
          %vm1009 = vmor %vm990, %vm1001
          %vm1010 = vmor %vm991, %vm1002
          %vm1011 = vmor %vm992, %vm1003
          %vm1012 = vmor %vm993, %vm1004
          %v1013 = vsel %vm1005, 1, 0
          %v1014 = vsel %vm1006, 1, 0
          %v1015 = vsel %vm1007, 1, 0
          %v1016 = vsel %vm1008, 1, 0
          %v1017 = vsel %vm1009, 1, 0
          %v1018 = vsel %vm1010, 1, 0
          %v1019 = vsel %vm1011, 1, 0
          %v1020 = vsel %vm1012, 1, 0
          %v1021 = vadd.s32 %v937, %v1013
          %v1022 = vadd.s32 %v938, %v1014
          %v1023 = vadd.s32 %v939, %v1015
          %v1024 = vadd.s32 %v940, %v1016
          %v1025 = vadd.s32 %v941, %v1017
          %v1026 = vadd.s32 %v942, %v1018
          %v1027 = vadd.s32 %v943, %v1019
          %v1028 = vadd.s32 %v944, %v1020
          %1029 = vset.pattern.permute.xlu0 0
          %1030 = vperm.xlu0 %1029, %v597
          %v1031 = vpop.permute.xlu0 %1030
          %vm1032 = vcmp.eq.s32.totalorder %v609, %v1031
          %vm1033 = vcmp.eq.s32.totalorder %v610, %v1031
          %vm1034 = vcmp.eq.s32.totalorder %v611, %v1031
          %vm1035 = vcmp.eq.s32.totalorder %v612, %v1031
          %vm1036 = vcmp.eq.s32.totalorder %v613, %v1031
          %vm1037 = vcmp.eq.s32.totalorder %v614, %v1031
          %vm1038 = vcmp.eq.s32.totalorder %v615, %v1031
          %vm1039 = vcmp.eq.s32.totalorder %v616, %v1031
          %1040 = vset.pattern.permute.xlu0 1
          %1041 = vperm.xlu0 %1040, %v597
          %v1042 = vpop.permute.xlu0 %1041
          %vm1043 = vcmp.eq.s32.totalorder %v609, %v1042
          %vm1044 = vcmp.eq.s32.totalorder %v610, %v1042
          %vm1045 = vcmp.eq.s32.totalorder %v611, %v1042
          %vm1046 = vcmp.eq.s32.totalorder %v612, %v1042
          %vm1047 = vcmp.eq.s32.totalorder %v613, %v1042
          %vm1048 = vcmp.eq.s32.totalorder %v614, %v1042
          %vm1049 = vcmp.eq.s32.totalorder %v615, %v1042
          %vm1050 = vcmp.eq.s32.totalorder %v616, %v1042
          %vm1051 = vmor %vm1032, %vm1043
          %vm1052 = vmor %vm1033, %vm1044
          %vm1053 = vmor %vm1034, %vm1045
          %vm1054 = vmor %vm1035, %vm1046
          %vm1055 = vmor %vm1036, %vm1047
          %vm1056 = vmor %vm1037, %vm1048
          %vm1057 = vmor %vm1038, %vm1049
          %vm1058 = vmor %vm1039, %vm1050
          %1059 = vset.pattern.permute.xlu0 2
          %1060 = vperm.xlu0 %1059, %v597
          %v1061 = vpop.permute.xlu0 %1060
          %vm1062 = vcmp.eq.s32.totalorder %v609, %v1061
          %vm1063 = vcmp.eq.s32.totalorder %v610, %v1061
          %vm1064 = vcmp.eq.s32.totalorder %v611, %v1061
          %vm1065 = vcmp.eq.s32.totalorder %v612, %v1061
          %vm1066 = vcmp.eq.s32.totalorder %v613, %v1061
          %vm1067 = vcmp.eq.s32.totalorder %v614, %v1061
          %vm1068 = vcmp.eq.s32.totalorder %v615, %v1061
          %vm1069 = vcmp.eq.s32.totalorder %v616, %v1061
          %vm1070 = vmor %vm1051, %vm1062
          %vm1071 = vmor %vm1052, %vm1063
          %vm1072 = vmor %vm1053, %vm1064
          %vm1073 = vmor %vm1054, %vm1065
          %vm1074 = vmor %vm1055, %vm1066
          %vm1075 = vmor %vm1056, %vm1067
          %vm1076 = vmor %vm1057, %vm1068
          %vm1077 = vmor %vm1058, %vm1069
          %1078 = vset.pattern.permute.xlu0 3
          %1079 = vperm.xlu0 %1078, %v597
          %v1080 = vpop.permute.xlu0 %1079
          %vm1081 = vcmp.eq.s32.totalorder %v609, %v1080
          %vm1082 = vcmp.eq.s32.totalorder %v610, %v1080
          %vm1083 = vcmp.eq.s32.totalorder %v611, %v1080
          %vm1084 = vcmp.eq.s32.totalorder %v612, %v1080
          %vm1085 = vcmp.eq.s32.totalorder %v613, %v1080
          %vm1086 = vcmp.eq.s32.totalorder %v614, %v1080
          %vm1087 = vcmp.eq.s32.totalorder %v615, %v1080
          %vm1088 = vcmp.eq.s32.totalorder %v616, %v1080
          %vm1089 = vmor %vm1070, %vm1081
          %vm1090 = vmor %vm1071, %vm1082
          %vm1091 = vmor %vm1072, %vm1083
          %vm1092 = vmor %vm1073, %vm1084
          %vm1093 = vmor %vm1074, %vm1085
          %vm1094 = vmor %vm1075, %vm1086
          %vm1095 = vmor %vm1076, %vm1087
          %vm1096 = vmor %vm1077, %vm1088
          %v1097 = vsel %vm1089, 1, 0
          %v1098 = vsel %vm1090, 1, 0
          %v1099 = vsel %vm1091, 1, 0
          %v1100 = vsel %vm1092, 1, 0
          %v1101 = vsel %vm1093, 1, 0
          %v1102 = vsel %vm1094, 1, 0
          %v1103 = vsel %vm1095, 1, 0
          %v1104 = vsel %vm1096, 1, 0
          %v1105 = vadd.s32 %v1021, %v1097
          %v1106 = vadd.s32 %v1022, %v1098
          %v1107 = vadd.s32 %v1023, %v1099
          %v1108 = vadd.s32 %v1024, %v1100
          %v1109 = vadd.s32 %v1025, %v1101
          %v1110 = vadd.s32 %v1026, %v1102
          %v1111 = vadd.s32 %v1027, %v1103
          %v1112 = vadd.s32 %v1028, %v1104
          %1113 = vset.pattern.permute.xlu0 0
          %1114 = vperm.xlu0 %1113, %v598
          %v1115 = vpop.permute.xlu0 %1114
          %vm1116 = vcmp.eq.s32.totalorder %v609, %v1115
          %vm1117 = vcmp.eq.s32.totalorder %v610, %v1115
          %vm1118 = vcmp.eq.s32.totalorder %v611, %v1115
          %vm1119 = vcmp.eq.s32.totalorder %v612, %v1115
          %vm1120 = vcmp.eq.s32.totalorder %v613, %v1115
          %vm1121 = vcmp.eq.s32.totalorder %v614, %v1115
          %vm1122 = vcmp.eq.s32.totalorder %v615, %v1115
          %vm1123 = vcmp.eq.s32.totalorder %v616, %v1115
          %1124 = vset.pattern.permute.xlu0 1
          %1125 = vperm.xlu0 %1124, %v598
          %v1126 = vpop.permute.xlu0 %1125
          %vm1127 = vcmp.eq.s32.totalorder %v609, %v1126
          %vm1128 = vcmp.eq.s32.totalorder %v610, %v1126
          %vm1129 = vcmp.eq.s32.totalorder %v611, %v1126
          %vm1130 = vcmp.eq.s32.totalorder %v612, %v1126
          %vm1131 = vcmp.eq.s32.totalorder %v613, %v1126
          %vm1132 = vcmp.eq.s32.totalorder %v614, %v1126
          %vm1133 = vcmp.eq.s32.totalorder %v615, %v1126
          %vm1134 = vcmp.eq.s32.totalorder %v616, %v1126
          %vm1135 = vmor %vm1116, %vm1127
          %vm1136 = vmor %vm1117, %vm1128
          %vm1137 = vmor %vm1118, %vm1129
          %vm1138 = vmor %vm1119, %vm1130
          %vm1139 = vmor %vm1120, %vm1131
          %vm1140 = vmor %vm1121, %vm1132
          %vm1141 = vmor %vm1122, %vm1133
          %vm1142 = vmor %vm1123, %vm1134
          %1143 = vset.pattern.permute.xlu0 2
          %1144 = vperm.xlu0 %1143, %v598
          %v1145 = vpop.permute.xlu0 %1144
          %vm1146 = vcmp.eq.s32.totalorder %v609, %v1145
          %vm1147 = vcmp.eq.s32.totalorder %v610, %v1145
          %vm1148 = vcmp.eq.s32.totalorder %v611, %v1145
          %vm1149 = vcmp.eq.s32.totalorder %v612, %v1145
          %vm1150 = vcmp.eq.s32.totalorder %v613, %v1145
          %vm1151 = vcmp.eq.s32.totalorder %v614, %v1145
          %vm1152 = vcmp.eq.s32.totalorder %v615, %v1145
          %vm1153 = vcmp.eq.s32.totalorder %v616, %v1145
          %vm1154 = vmor %vm1135, %vm1146
          %vm1155 = vmor %vm1136, %vm1147
          %vm1156 = vmor %vm1137, %vm1148
          %vm1157 = vmor %vm1138, %vm1149
          %vm1158 = vmor %vm1139, %vm1150
          %vm1159 = vmor %vm1140, %vm1151
          %vm1160 = vmor %vm1141, %vm1152
          %vm1161 = vmor %vm1142, %vm1153
          %1162 = vset.pattern.permute.xlu0 3
          %1163 = vperm.xlu0 %1162, %v598
          %v1164 = vpop.permute.xlu0 %1163
          %vm1165 = vcmp.eq.s32.totalorder %v609, %v1164
          %vm1166 = vcmp.eq.s32.totalorder %v610, %v1164
          %vm1167 = vcmp.eq.s32.totalorder %v611, %v1164
          %vm1168 = vcmp.eq.s32.totalorder %v612, %v1164
          %vm1169 = vcmp.eq.s32.totalorder %v613, %v1164
          %vm1170 = vcmp.eq.s32.totalorder %v614, %v1164
          %vm1171 = vcmp.eq.s32.totalorder %v615, %v1164
          %vm1172 = vcmp.eq.s32.totalorder %v616, %v1164
          %vm1173 = vmor %vm1154, %vm1165
          %vm1174 = vmor %vm1155, %vm1166
          %vm1175 = vmor %vm1156, %vm1167
          %vm1176 = vmor %vm1157, %vm1168
          %vm1177 = vmor %vm1158, %vm1169
          %vm1178 = vmor %vm1159, %vm1170
          %vm1179 = vmor %vm1160, %vm1171
          %vm1180 = vmor %vm1161, %vm1172
          %v1181 = vsel %vm1173, 1, 0
          %v1182 = vsel %vm1174, 1, 0
          %v1183 = vsel %vm1175, 1, 0
          %v1184 = vsel %vm1176, 1, 0
          %v1185 = vsel %vm1177, 1, 0
          %v1186 = vsel %vm1178, 1, 0
          %v1187 = vsel %vm1179, 1, 0
          %v1188 = vsel %vm1180, 1, 0
          %v1189 = vadd.s32 %v1105, %v1181
          %v1190 = vadd.s32 %v1106, %v1182
          %v1191 = vadd.s32 %v1107, %v1183
          %v1192 = vadd.s32 %v1108, %v1184
          %v1193 = vadd.s32 %v1109, %v1185
          %v1194 = vadd.s32 %v1110, %v1186
          %v1195 = vadd.s32 %v1111, %v1187
          %v1196 = vadd.s32 %v1112, %v1188
          %1197 = vset.pattern.permute.xlu0 0
          %1198 = vperm.xlu0 %1197, %v599
          %v1199 = vpop.permute.xlu0 %1198
          %vm1200 = vcmp.eq.s32.totalorder %v609, %v1199
          %vm1201 = vcmp.eq.s32.totalorder %v610, %v1199
          %vm1202 = vcmp.eq.s32.totalorder %v611, %v1199
          %vm1203 = vcmp.eq.s32.totalorder %v612, %v1199
          %vm1204 = vcmp.eq.s32.totalorder %v613, %v1199
          %vm1205 = vcmp.eq.s32.totalorder %v614, %v1199
          %vm1206 = vcmp.eq.s32.totalorder %v615, %v1199
          %vm1207 = vcmp.eq.s32.totalorder %v616, %v1199
          %1208 = vset.pattern.permute.xlu0 1
          %1209 = vperm.xlu0 %1208, %v599
          %v1210 = vpop.permute.xlu0 %1209
          %vm1211 = vcmp.eq.s32.totalorder %v609, %v1210
          %vm1212 = vcmp.eq.s32.totalorder %v610, %v1210
          %vm1213 = vcmp.eq.s32.totalorder %v611, %v1210
          %vm1214 = vcmp.eq.s32.totalorder %v612, %v1210
          %vm1215 = vcmp.eq.s32.totalorder %v613, %v1210
          %vm1216 = vcmp.eq.s32.totalorder %v614, %v1210
          %vm1217 = vcmp.eq.s32.totalorder %v615, %v1210
          %vm1218 = vcmp.eq.s32.totalorder %v616, %v1210
          %vm1219 = vmor %vm1200, %vm1211
          %vm1220 = vmor %vm1201, %vm1212
          %vm1221 = vmor %vm1202, %vm1213
          %vm1222 = vmor %vm1203, %vm1214
          %vm1223 = vmor %vm1204, %vm1215
          %vm1224 = vmor %vm1205, %vm1216
          %vm1225 = vmor %vm1206, %vm1217
          %vm1226 = vmor %vm1207, %vm1218
          %1227 = vset.pattern.permute.xlu0 2
          %1228 = vperm.xlu0 %1227, %v599
          %v1229 = vpop.permute.xlu0 %1228
          %vm1230 = vcmp.eq.s32.totalorder %v609, %v1229
          %vm1231 = vcmp.eq.s32.totalorder %v610, %v1229
          %vm1232 = vcmp.eq.s32.totalorder %v611, %v1229
          %vm1233 = vcmp.eq.s32.totalorder %v612, %v1229
          %vm1234 = vcmp.eq.s32.totalorder %v613, %v1229
          %vm1235 = vcmp.eq.s32.totalorder %v614, %v1229
          %vm1236 = vcmp.eq.s32.totalorder %v615, %v1229
          %vm1237 = vcmp.eq.s32.totalorder %v616, %v1229
          %vm1238 = vmor %vm1219, %vm1230
          %vm1239 = vmor %vm1220, %vm1231
          %vm1240 = vmor %vm1221, %vm1232
          %vm1241 = vmor %vm1222, %vm1233
          %vm1242 = vmor %vm1223, %vm1234
          %vm1243 = vmor %vm1224, %vm1235
          %vm1244 = vmor %vm1225, %vm1236
          %vm1245 = vmor %vm1226, %vm1237
          %1246 = vset.pattern.permute.xlu0 3
          %1247 = vperm.xlu0 %1246, %v599
          %v1248 = vpop.permute.xlu0 %1247
          %vm1249 = vcmp.eq.s32.totalorder %v609, %v1248
          %vm1250 = vcmp.eq.s32.totalorder %v610, %v1248
          %vm1251 = vcmp.eq.s32.totalorder %v611, %v1248
          %vm1252 = vcmp.eq.s32.totalorder %v612, %v1248
          %vm1253 = vcmp.eq.s32.totalorder %v613, %v1248
          %vm1254 = vcmp.eq.s32.totalorder %v614, %v1248
          %vm1255 = vcmp.eq.s32.totalorder %v615, %v1248
          %vm1256 = vcmp.eq.s32.totalorder %v616, %v1248
          %vm1257 = vmor %vm1238, %vm1249
          %vm1258 = vmor %vm1239, %vm1250
          %vm1259 = vmor %vm1240, %vm1251
          %vm1260 = vmor %vm1241, %vm1252
          %vm1261 = vmor %vm1242, %vm1253
          %vm1262 = vmor %vm1243, %vm1254
          %vm1263 = vmor %vm1244, %vm1255
          %vm1264 = vmor %vm1245, %vm1256
          %v1265 = vsel %vm1257, 1, 0
          %v1266 = vsel %vm1258, 1, 0
          %v1267 = vsel %vm1259, 1, 0
          %v1268 = vsel %vm1260, 1, 0
          %v1269 = vsel %vm1261, 1, 0
          %v1270 = vsel %vm1262, 1, 0
          %v1271 = vsel %vm1263, 1, 0
          %v1272 = vsel %vm1264, 1, 0
          %v1273 = vadd.s32 %v1189, %v1265
          %v1274 = vadd.s32 %v1190, %v1266
          %v1275 = vadd.s32 %v1191, %v1267
          %v1276 = vadd.s32 %v1192, %v1268
          %v1277 = vadd.s32 %v1193, %v1269
          %v1278 = vadd.s32 %v1194, %v1270
          %v1279 = vadd.s32 %v1195, %v1271
          %v1280 = vadd.s32 %v1196, %v1272
          %1281 = vset.pattern.permute.xlu0 0
          %1282 = vperm.xlu0 %1281, %v600
          %v1283 = vpop.permute.xlu0 %1282
          %vm1284 = vcmp.eq.s32.totalorder %v609, %v1283
          %vm1285 = vcmp.eq.s32.totalorder %v610, %v1283
          %vm1286 = vcmp.eq.s32.totalorder %v611, %v1283
          %vm1287 = vcmp.eq.s32.totalorder %v612, %v1283
          %vm1288 = vcmp.eq.s32.totalorder %v613, %v1283
          %vm1289 = vcmp.eq.s32.totalorder %v614, %v1283
          %vm1290 = vcmp.eq.s32.totalorder %v615, %v1283
          %vm1291 = vcmp.eq.s32.totalorder %v616, %v1283
          %1292 = vset.pattern.permute.xlu0 1
          %1293 = vperm.xlu0 %1292, %v600
          %v1294 = vpop.permute.xlu0 %1293
          %vm1295 = vcmp.eq.s32.totalorder %v609, %v1294
          %vm1296 = vcmp.eq.s32.totalorder %v610, %v1294
          %vm1297 = vcmp.eq.s32.totalorder %v611, %v1294
          %vm1298 = vcmp.eq.s32.totalorder %v612, %v1294
          %vm1299 = vcmp.eq.s32.totalorder %v613, %v1294
          %vm1300 = vcmp.eq.s32.totalorder %v614, %v1294
          %vm1301 = vcmp.eq.s32.totalorder %v615, %v1294
          %vm1302 = vcmp.eq.s32.totalorder %v616, %v1294
          %vm1303 = vmor %vm1284, %vm1295
          %vm1304 = vmor %vm1285, %vm1296
          %vm1305 = vmor %vm1286, %vm1297
          %vm1306 = vmor %vm1287, %vm1298
          %vm1307 = vmor %vm1288, %vm1299
          %vm1308 = vmor %vm1289, %vm1300
          %vm1309 = vmor %vm1290, %vm1301
          %vm1310 = vmor %vm1291, %vm1302
          %1311 = vset.pattern.permute.xlu0 2
          %1312 = vperm.xlu0 %1311, %v600
          %v1313 = vpop.permute.xlu0 %1312
          %vm1314 = vcmp.eq.s32.totalorder %v609, %v1313
          %vm1315 = vcmp.eq.s32.totalorder %v610, %v1313
          %vm1316 = vcmp.eq.s32.totalorder %v611, %v1313
          %vm1317 = vcmp.eq.s32.totalorder %v612, %v1313
          %vm1318 = vcmp.eq.s32.totalorder %v613, %v1313
          %vm1319 = vcmp.eq.s32.totalorder %v614, %v1313
          %vm1320 = vcmp.eq.s32.totalorder %v615, %v1313
          %vm1321 = vcmp.eq.s32.totalorder %v616, %v1313
          %vm1322 = vmor %vm1303, %vm1314
          %vm1323 = vmor %vm1304, %vm1315
          %vm1324 = vmor %vm1305, %vm1316
          %vm1325 = vmor %vm1306, %vm1317
          %vm1326 = vmor %vm1307, %vm1318
          %vm1327 = vmor %vm1308, %vm1319
          %vm1328 = vmor %vm1309, %vm1320
          %vm1329 = vmor %vm1310, %vm1321
          %1330 = vset.pattern.permute.xlu0 3
          %1331 = vperm.xlu0 %1330, %v600
          %v1332 = vpop.permute.xlu0 %1331
          %vm1333 = vcmp.eq.s32.totalorder %v609, %v1332
          %vm1334 = vcmp.eq.s32.totalorder %v610, %v1332
          %vm1335 = vcmp.eq.s32.totalorder %v611, %v1332
          %vm1336 = vcmp.eq.s32.totalorder %v612, %v1332
          %vm1337 = vcmp.eq.s32.totalorder %v613, %v1332
          %vm1338 = vcmp.eq.s32.totalorder %v614, %v1332
          %vm1339 = vcmp.eq.s32.totalorder %v615, %v1332
          %vm1340 = vcmp.eq.s32.totalorder %v616, %v1332
          %vm1341 = vmor %vm1322, %vm1333
          %vm1342 = vmor %vm1323, %vm1334
          %vm1343 = vmor %vm1324, %vm1335
          %vm1344 = vmor %vm1325, %vm1336
          %vm1345 = vmor %vm1326, %vm1337
          %vm1346 = vmor %vm1327, %vm1338
          %vm1347 = vmor %vm1328, %vm1339
          %vm1348 = vmor %vm1329, %vm1340
          %v1349 = vsel %vm1341, 1, 0
          %v1350 = vsel %vm1342, 1, 0
          %v1351 = vsel %vm1343, 1, 0
          %v1352 = vsel %vm1344, 1, 0
          %v1353 = vsel %vm1345, 1, 0
          %v1354 = vsel %vm1346, 1, 0
          %v1355 = vsel %vm1347, 1, 0
          %v1356 = vsel %vm1348, 1, 0
          %v1357 = vadd.s32 %v1273, %v1349
          %v1358 = vadd.s32 %v1274, %v1350
          %v1359 = vadd.s32 %v1275, %v1351
          %v1360 = vadd.s32 %v1276, %v1352
          %v1361 = vadd.s32 %v1277, %v1353
          %v1362 = vadd.s32 %v1278, %v1354
          %v1363 = vadd.s32 %v1279, %v1355
          %v1364 = vadd.s32 %v1280, %v1356
          %1365 = vset.pattern.permute.xlu0 0
          %1366 = vperm.xlu0 %1365, %v601
          %v1367 = vpop.permute.xlu0 %1366
          %vm1368 = vcmp.eq.s32.totalorder %v609, %v1367
          %vm1369 = vcmp.eq.s32.totalorder %v610, %v1367
          %vm1370 = vcmp.eq.s32.totalorder %v611, %v1367
          %vm1371 = vcmp.eq.s32.totalorder %v612, %v1367
          %vm1372 = vcmp.eq.s32.totalorder %v613, %v1367
          %vm1373 = vcmp.eq.s32.totalorder %v614, %v1367
          %vm1374 = vcmp.eq.s32.totalorder %v615, %v1367
          %vm1375 = vcmp.eq.s32.totalorder %v616, %v1367
          %1376 = vset.pattern.permute.xlu0 1
          %1377 = vperm.xlu0 %1376, %v601
          %v1378 = vpop.permute.xlu0 %1377
          %vm1379 = vcmp.eq.s32.totalorder %v609, %v1378
          %vm1380 = vcmp.eq.s32.totalorder %v610, %v1378
          %vm1381 = vcmp.eq.s32.totalorder %v611, %v1378
          %vm1382 = vcmp.eq.s32.totalorder %v612, %v1378
          %vm1383 = vcmp.eq.s32.totalorder %v613, %v1378
          %vm1384 = vcmp.eq.s32.totalorder %v614, %v1378
          %vm1385 = vcmp.eq.s32.totalorder %v615, %v1378
          %vm1386 = vcmp.eq.s32.totalorder %v616, %v1378
          %vm1387 = vmor %vm1368, %vm1379
          %vm1388 = vmor %vm1369, %vm1380
          %vm1389 = vmor %vm1370, %vm1381
          %vm1390 = vmor %vm1371, %vm1382
          %vm1391 = vmor %vm1372, %vm1383
          %vm1392 = vmor %vm1373, %vm1384
          %vm1393 = vmor %vm1374, %vm1385
          %vm1394 = vmor %vm1375, %vm1386
          %1395 = vset.pattern.permute.xlu0 2
          %1396 = vperm.xlu0 %1395, %v601
          %v1397 = vpop.permute.xlu0 %1396
          %vm1398 = vcmp.eq.s32.totalorder %v609, %v1397
          %vm1399 = vcmp.eq.s32.totalorder %v610, %v1397
          %vm1400 = vcmp.eq.s32.totalorder %v611, %v1397
          %vm1401 = vcmp.eq.s32.totalorder %v612, %v1397
          %vm1402 = vcmp.eq.s32.totalorder %v613, %v1397
          %vm1403 = vcmp.eq.s32.totalorder %v614, %v1397
          %vm1404 = vcmp.eq.s32.totalorder %v615, %v1397
          %vm1405 = vcmp.eq.s32.totalorder %v616, %v1397
          %vm1406 = vmor %vm1387, %vm1398
          %vm1407 = vmor %vm1388, %vm1399
          %vm1408 = vmor %vm1389, %vm1400
          %vm1409 = vmor %vm1390, %vm1401
          %vm1410 = vmor %vm1391, %vm1402
          %vm1411 = vmor %vm1392, %vm1403
          %vm1412 = vmor %vm1393, %vm1404
          %vm1413 = vmor %vm1394, %vm1405
          %1414 = vset.pattern.permute.xlu0 3
          %1415 = vperm.xlu0 %1414, %v601
          %v1416 = vpop.permute.xlu0 %1415
          %vm1417 = vcmp.eq.s32.totalorder %v609, %v1416
          %vm1418 = vcmp.eq.s32.totalorder %v610, %v1416
          %vm1419 = vcmp.eq.s32.totalorder %v611, %v1416
          %vm1420 = vcmp.eq.s32.totalorder %v612, %v1416
          %vm1421 = vcmp.eq.s32.totalorder %v613, %v1416
          %vm1422 = vcmp.eq.s32.totalorder %v614, %v1416
          %vm1423 = vcmp.eq.s32.totalorder %v615, %v1416
          %vm1424 = vcmp.eq.s32.totalorder %v616, %v1416
          %vm1425 = vmor %vm1406, %vm1417
          %vm1426 = vmor %vm1407, %vm1418
          %vm1427 = vmor %vm1408, %vm1419
          %vm1428 = vmor %vm1409, %vm1420
          %vm1429 = vmor %vm1410, %vm1421
          %vm1430 = vmor %vm1411, %vm1422
          %vm1431 = vmor %vm1412, %vm1423
          %vm1432 = vmor %vm1413, %vm1424
          %v1433 = vsel %vm1425, 1, 0
          %v1434 = vsel %vm1426, 1, 0
          %v1435 = vsel %vm1427, 1, 0
          %v1436 = vsel %vm1428, 1, 0
          %v1437 = vsel %vm1429, 1, 0
          %v1438 = vsel %vm1430, 1, 0
          %v1439 = vsel %vm1431, 1, 0
          %v1440 = vsel %vm1432, 1, 0
          %v1441 = vadd.s32 %v1357, %v1433
          %v1442 = vadd.s32 %v1358, %v1434
          %v1443 = vadd.s32 %v1359, %v1435
          %v1444 = vadd.s32 %v1360, %v1436
          %v1445 = vadd.s32 %v1361, %v1437
          %v1446 = vadd.s32 %v1362, %v1438
          %v1447 = vadd.s32 %v1363, %v1439
          %v1448 = vadd.s32 %v1364, %v1440
          %1449 = vset.pattern.permute.xlu0 0
          %1450 = vperm.xlu0 %1449, %v602
          %v1451 = vpop.permute.xlu0 %1450
          %vm1452 = vcmp.eq.s32.totalorder %v609, %v1451
          %vm1453 = vcmp.eq.s32.totalorder %v610, %v1451
          %vm1454 = vcmp.eq.s32.totalorder %v611, %v1451
          %vm1455 = vcmp.eq.s32.totalorder %v612, %v1451
          %vm1456 = vcmp.eq.s32.totalorder %v613, %v1451
          %vm1457 = vcmp.eq.s32.totalorder %v614, %v1451
          %vm1458 = vcmp.eq.s32.totalorder %v615, %v1451
          %vm1459 = vcmp.eq.s32.totalorder %v616, %v1451
          %1460 = vset.pattern.permute.xlu0 1
          %1461 = vperm.xlu0 %1460, %v602
          %v1462 = vpop.permute.xlu0 %1461
          %vm1463 = vcmp.eq.s32.totalorder %v609, %v1462
          %vm1464 = vcmp.eq.s32.totalorder %v610, %v1462
          %vm1465 = vcmp.eq.s32.totalorder %v611, %v1462
          %vm1466 = vcmp.eq.s32.totalorder %v612, %v1462
          %vm1467 = vcmp.eq.s32.totalorder %v613, %v1462
          %vm1468 = vcmp.eq.s32.totalorder %v614, %v1462
          %vm1469 = vcmp.eq.s32.totalorder %v615, %v1462
          %vm1470 = vcmp.eq.s32.totalorder %v616, %v1462
          %vm1471 = vmor %vm1452, %vm1463
          %vm1472 = vmor %vm1453, %vm1464
          %vm1473 = vmor %vm1454, %vm1465
          %vm1474 = vmor %vm1455, %vm1466
          %vm1475 = vmor %vm1456, %vm1467
          %vm1476 = vmor %vm1457, %vm1468
          %vm1477 = vmor %vm1458, %vm1469
          %vm1478 = vmor %vm1459, %vm1470
          %1479 = vset.pattern.permute.xlu0 2
          %1480 = vperm.xlu0 %1479, %v602
          %v1481 = vpop.permute.xlu0 %1480
          %vm1482 = vcmp.eq.s32.totalorder %v609, %v1481
          %vm1483 = vcmp.eq.s32.totalorder %v610, %v1481
          %vm1484 = vcmp.eq.s32.totalorder %v611, %v1481
          %vm1485 = vcmp.eq.s32.totalorder %v612, %v1481
          %vm1486 = vcmp.eq.s32.totalorder %v613, %v1481
          %vm1487 = vcmp.eq.s32.totalorder %v614, %v1481
          %vm1488 = vcmp.eq.s32.totalorder %v615, %v1481
          %vm1489 = vcmp.eq.s32.totalorder %v616, %v1481
          %vm1490 = vmor %vm1471, %vm1482
          %vm1491 = vmor %vm1472, %vm1483
          %vm1492 = vmor %vm1473, %vm1484
          %vm1493 = vmor %vm1474, %vm1485
          %vm1494 = vmor %vm1475, %vm1486
          %vm1495 = vmor %vm1476, %vm1487
          %vm1496 = vmor %vm1477, %vm1488
          %vm1497 = vmor %vm1478, %vm1489
          %1498 = vset.pattern.permute.xlu0 3
          %1499 = vperm.xlu0 %1498, %v602
          %v1500 = vpop.permute.xlu0 %1499
          %vm1501 = vcmp.eq.s32.totalorder %v609, %v1500
          %vm1502 = vcmp.eq.s32.totalorder %v610, %v1500
          %vm1503 = vcmp.eq.s32.totalorder %v611, %v1500
          %vm1504 = vcmp.eq.s32.totalorder %v612, %v1500
          %vm1505 = vcmp.eq.s32.totalorder %v613, %v1500
          %vm1506 = vcmp.eq.s32.totalorder %v614, %v1500
          %vm1507 = vcmp.eq.s32.totalorder %v615, %v1500
          %vm1508 = vcmp.eq.s32.totalorder %v616, %v1500
          %vm1509 = vmor %vm1490, %vm1501
          %vm1510 = vmor %vm1491, %vm1502
          %vm1511 = vmor %vm1492, %vm1503
          %vm1512 = vmor %vm1493, %vm1504
          %vm1513 = vmor %vm1494, %vm1505
          %vm1514 = vmor %vm1495, %vm1506
          %vm1515 = vmor %vm1496, %vm1507
          %vm1516 = vmor %vm1497, %vm1508
          %v1517 = vsel %vm1509, 1, 0
          %v1518 = vsel %vm1510, 1, 0
          %v1519 = vsel %vm1511, 1, 0
          %v1520 = vsel %vm1512, 1, 0
          %v1521 = vsel %vm1513, 1, 0
          %v1522 = vsel %vm1514, 1, 0
          %v1523 = vsel %vm1515, 1, 0
          %v1524 = vsel %vm1516, 1, 0
          %v1525 = vadd.s32 %v1441, %v1517
          %v1526 = vadd.s32 %v1442, %v1518
          %v1527 = vadd.s32 %v1443, %v1519
          %v1528 = vadd.s32 %v1444, %v1520
          %v1529 = vadd.s32 %v1445, %v1521
          %v1530 = vadd.s32 %v1446, %v1522
          %v1531 = vadd.s32 %v1447, %v1523
          %v1532 = vadd.s32 %v1448, %v1524
          %1533 = vset.pattern.permute.xlu0 0
          %1534 = vperm.xlu0 %1533, %v603
          %v1535 = vpop.permute.xlu0 %1534
          %vm1536 = vcmp.eq.s32.totalorder %v609, %v1535
          %vm1537 = vcmp.eq.s32.totalorder %v610, %v1535
          %vm1538 = vcmp.eq.s32.totalorder %v611, %v1535
          %vm1539 = vcmp.eq.s32.totalorder %v612, %v1535
          %vm1540 = vcmp.eq.s32.totalorder %v613, %v1535
          %vm1541 = vcmp.eq.s32.totalorder %v614, %v1535
          %vm1542 = vcmp.eq.s32.totalorder %v615, %v1535
          %vm1543 = vcmp.eq.s32.totalorder %v616, %v1535
          %1544 = vset.pattern.permute.xlu0 1
          %1545 = vperm.xlu0 %1544, %v603
          %v1546 = vpop.permute.xlu0 %1545
          %vm1547 = vcmp.eq.s32.totalorder %v609, %v1546
          %vm1548 = vcmp.eq.s32.totalorder %v610, %v1546
          %vm1549 = vcmp.eq.s32.totalorder %v611, %v1546
          %vm1550 = vcmp.eq.s32.totalorder %v612, %v1546
          %vm1551 = vcmp.eq.s32.totalorder %v613, %v1546
          %vm1552 = vcmp.eq.s32.totalorder %v614, %v1546
          %vm1553 = vcmp.eq.s32.totalorder %v615, %v1546
          %vm1554 = vcmp.eq.s32.totalorder %v616, %v1546
          %vm1555 = vmor %vm1536, %vm1547
          %vm1556 = vmor %vm1537, %vm1548
          %vm1557 = vmor %vm1538, %vm1549
          %vm1558 = vmor %vm1539, %vm1550
          %vm1559 = vmor %vm1540, %vm1551
          %vm1560 = vmor %vm1541, %vm1552
          %vm1561 = vmor %vm1542, %vm1553
          %vm1562 = vmor %vm1543, %vm1554
          %1563 = vset.pattern.permute.xlu0 2
          %1564 = vperm.xlu0 %1563, %v603
          %v1565 = vpop.permute.xlu0 %1564
          %vm1566 = vcmp.eq.s32.totalorder %v609, %v1565
          %vm1567 = vcmp.eq.s32.totalorder %v610, %v1565
          %vm1568 = vcmp.eq.s32.totalorder %v611, %v1565
          %vm1569 = vcmp.eq.s32.totalorder %v612, %v1565
          %vm1570 = vcmp.eq.s32.totalorder %v613, %v1565
          %vm1571 = vcmp.eq.s32.totalorder %v614, %v1565
          %vm1572 = vcmp.eq.s32.totalorder %v615, %v1565
          %vm1573 = vcmp.eq.s32.totalorder %v616, %v1565
          %vm1574 = vmor %vm1555, %vm1566
          %vm1575 = vmor %vm1556, %vm1567
          %vm1576 = vmor %vm1557, %vm1568
          %vm1577 = vmor %vm1558, %vm1569
          %vm1578 = vmor %vm1559, %vm1570
          %vm1579 = vmor %vm1560, %vm1571
          %vm1580 = vmor %vm1561, %vm1572
          %vm1581 = vmor %vm1562, %vm1573
          %1582 = vset.pattern.permute.xlu0 3
          %1583 = vperm.xlu0 %1582, %v603
          %v1584 = vpop.permute.xlu0 %1583
          %vm1585 = vcmp.eq.s32.totalorder %v609, %v1584
          %vm1586 = vcmp.eq.s32.totalorder %v610, %v1584
          %vm1587 = vcmp.eq.s32.totalorder %v611, %v1584
          %vm1588 = vcmp.eq.s32.totalorder %v612, %v1584
          %vm1589 = vcmp.eq.s32.totalorder %v613, %v1584
          %vm1590 = vcmp.eq.s32.totalorder %v614, %v1584
          %vm1591 = vcmp.eq.s32.totalorder %v615, %v1584
          %vm1592 = vcmp.eq.s32.totalorder %v616, %v1584
          %vm1593 = vmor %vm1574, %vm1585
          %vm1594 = vmor %vm1575, %vm1586
          %vm1595 = vmor %vm1576, %vm1587
          %vm1596 = vmor %vm1577, %vm1588
          %vm1597 = vmor %vm1578, %vm1589
          %vm1598 = vmor %vm1579, %vm1590
          %vm1599 = vmor %vm1580, %vm1591
          %vm1600 = vmor %vm1581, %vm1592
          %v1601 = vsel %vm1593, 1, 0
          %v1602 = vsel %vm1594, 1, 0
          %v1603 = vsel %vm1595, 1, 0
          %v1604 = vsel %vm1596, 1, 0
          %v1605 = vsel %vm1597, 1, 0
          %v1606 = vsel %vm1598, 1, 0
          %v1607 = vsel %vm1599, 1, 0
          %v1608 = vsel %vm1600, 1, 0
          %v1609 = vadd.s32 %v1525, %v1601
          %v1610 = vadd.s32 %v1526, %v1602
          %v1611 = vadd.s32 %v1527, %v1603
          %v1612 = vadd.s32 %v1528, %v1604
          %v1613 = vadd.s32 %v1529, %v1605
          %v1614 = vadd.s32 %v1530, %v1606
          %v1615 = vadd.s32 %v1531, %v1607
          %v1616 = vadd.s32 %v1532, %v1608
          %1617 = vset.pattern.permute.xlu0 0
          %1618 = vperm.xlu0 %1617, %v604
          %v1619 = vpop.permute.xlu0 %1618
          %vm1620 = vcmp.eq.s32.totalorder %v609, %v1619
          %vm1621 = vcmp.eq.s32.totalorder %v610, %v1619
          %vm1622 = vcmp.eq.s32.totalorder %v611, %v1619
          %vm1623 = vcmp.eq.s32.totalorder %v612, %v1619
          %vm1624 = vcmp.eq.s32.totalorder %v613, %v1619
          %vm1625 = vcmp.eq.s32.totalorder %v614, %v1619
          %vm1626 = vcmp.eq.s32.totalorder %v615, %v1619
          %vm1627 = vcmp.eq.s32.totalorder %v616, %v1619
          %1628 = vset.pattern.permute.xlu0 1
          %1629 = vperm.xlu0 %1628, %v604
          %v1630 = vpop.permute.xlu0 %1629
          %vm1631 = vcmp.eq.s32.totalorder %v609, %v1630
          %vm1632 = vcmp.eq.s32.totalorder %v610, %v1630
          %vm1633 = vcmp.eq.s32.totalorder %v611, %v1630
          %vm1634 = vcmp.eq.s32.totalorder %v612, %v1630
          %vm1635 = vcmp.eq.s32.totalorder %v613, %v1630
          %vm1636 = vcmp.eq.s32.totalorder %v614, %v1630
          %vm1637 = vcmp.eq.s32.totalorder %v615, %v1630
          %vm1638 = vcmp.eq.s32.totalorder %v616, %v1630
          %vm1639 = vmor %vm1620, %vm1631
          %vm1640 = vmor %vm1621, %vm1632
          %vm1641 = vmor %vm1622, %vm1633
          %vm1642 = vmor %vm1623, %vm1634
          %vm1643 = vmor %vm1624, %vm1635
          %vm1644 = vmor %vm1625, %vm1636
          %vm1645 = vmor %vm1626, %vm1637
          %vm1646 = vmor %vm1627, %vm1638
          %1647 = vset.pattern.permute.xlu0 2
          %1648 = vperm.xlu0 %1647, %v604
          %v1649 = vpop.permute.xlu0 %1648
          %vm1650 = vcmp.eq.s32.totalorder %v609, %v1649
          %vm1651 = vcmp.eq.s32.totalorder %v610, %v1649
          %vm1652 = vcmp.eq.s32.totalorder %v611, %v1649
          %vm1653 = vcmp.eq.s32.totalorder %v612, %v1649
          %vm1654 = vcmp.eq.s32.totalorder %v613, %v1649
          %vm1655 = vcmp.eq.s32.totalorder %v614, %v1649
          %vm1656 = vcmp.eq.s32.totalorder %v615, %v1649
          %vm1657 = vcmp.eq.s32.totalorder %v616, %v1649
          %vm1658 = vmor %vm1639, %vm1650
          %vm1659 = vmor %vm1640, %vm1651
          %vm1660 = vmor %vm1641, %vm1652
          %vm1661 = vmor %vm1642, %vm1653
          %vm1662 = vmor %vm1643, %vm1654
          %vm1663 = vmor %vm1644, %vm1655
          %vm1664 = vmor %vm1645, %vm1656
          %vm1665 = vmor %vm1646, %vm1657
          %1666 = vset.pattern.permute.xlu0 3
          %1667 = vperm.xlu0 %1666, %v604
          %v1668 = vpop.permute.xlu0 %1667
          %vm1669 = vcmp.eq.s32.totalorder %v609, %v1668
          %vm1670 = vcmp.eq.s32.totalorder %v610, %v1668
          %vm1671 = vcmp.eq.s32.totalorder %v611, %v1668
          %vm1672 = vcmp.eq.s32.totalorder %v612, %v1668
          %vm1673 = vcmp.eq.s32.totalorder %v613, %v1668
          %vm1674 = vcmp.eq.s32.totalorder %v614, %v1668
          %vm1675 = vcmp.eq.s32.totalorder %v615, %v1668
          %vm1676 = vcmp.eq.s32.totalorder %v616, %v1668
          %vm1677 = vmor %vm1658, %vm1669
          %vm1678 = vmor %vm1659, %vm1670
          %vm1679 = vmor %vm1660, %vm1671
          %vm1680 = vmor %vm1661, %vm1672
          %vm1681 = vmor %vm1662, %vm1673
          %vm1682 = vmor %vm1663, %vm1674
          %vm1683 = vmor %vm1664, %vm1675
          %vm1684 = vmor %vm1665, %vm1676
          %v1685 = vsel %vm1677, 1, 0
          %v1686 = vsel %vm1678, 1, 0
          %v1687 = vsel %vm1679, 1, 0
          %v1688 = vsel %vm1680, 1, 0
          %v1689 = vsel %vm1681, 1, 0
          %v1690 = vsel %vm1682, 1, 0
          %v1691 = vsel %vm1683, 1, 0
          %v1692 = vsel %vm1684, 1, 0
          %v1693 = vadd.s32 %v1609, %v1685
          %v1694 = vadd.s32 %v1610, %v1686
          %v1695 = vadd.s32 %v1611, %v1687
          %v1696 = vadd.s32 %v1612, %v1688
          %v1697 = vadd.s32 %v1613, %v1689
          %v1698 = vadd.s32 %v1614, %v1690
          %v1699 = vadd.s32 %v1615, %v1691
          %v1700 = vadd.s32 %v1616, %v1692
          %1701 = vset.pattern.permute.xlu0 0
          %1702 = vperm.xlu0 %1701, %v605
          %v1703 = vpop.permute.xlu0 %1702
          %vm1704 = vcmp.eq.s32.totalorder %v609, %v1703
          %vm1705 = vcmp.eq.s32.totalorder %v610, %v1703
          %vm1706 = vcmp.eq.s32.totalorder %v611, %v1703
          %vm1707 = vcmp.eq.s32.totalorder %v612, %v1703
          %vm1708 = vcmp.eq.s32.totalorder %v613, %v1703
          %vm1709 = vcmp.eq.s32.totalorder %v614, %v1703
          %vm1710 = vcmp.eq.s32.totalorder %v615, %v1703
          %vm1711 = vcmp.eq.s32.totalorder %v616, %v1703
          %1712 = vset.pattern.permute.xlu0 1
          %1713 = vperm.xlu0 %1712, %v605
          %v1714 = vpop.permute.xlu0 %1713
          %vm1715 = vcmp.eq.s32.totalorder %v609, %v1714
          %vm1716 = vcmp.eq.s32.totalorder %v610, %v1714
          %vm1717 = vcmp.eq.s32.totalorder %v611, %v1714
          %vm1718 = vcmp.eq.s32.totalorder %v612, %v1714
          %vm1719 = vcmp.eq.s32.totalorder %v613, %v1714
          %vm1720 = vcmp.eq.s32.totalorder %v614, %v1714
          %vm1721 = vcmp.eq.s32.totalorder %v615, %v1714
          %vm1722 = vcmp.eq.s32.totalorder %v616, %v1714
          %vm1723 = vmor %vm1704, %vm1715
          %vm1724 = vmor %vm1705, %vm1716
          %vm1725 = vmor %vm1706, %vm1717
          %vm1726 = vmor %vm1707, %vm1718
          %vm1727 = vmor %vm1708, %vm1719
          %vm1728 = vmor %vm1709, %vm1720
          %vm1729 = vmor %vm1710, %vm1721
          %vm1730 = vmor %vm1711, %vm1722
          %1731 = vset.pattern.permute.xlu0 2
          %1732 = vperm.xlu0 %1731, %v605
          %v1733 = vpop.permute.xlu0 %1732
          %vm1734 = vcmp.eq.s32.totalorder %v609, %v1733
          %vm1735 = vcmp.eq.s32.totalorder %v610, %v1733
          %vm1736 = vcmp.eq.s32.totalorder %v611, %v1733
          %vm1737 = vcmp.eq.s32.totalorder %v612, %v1733
          %vm1738 = vcmp.eq.s32.totalorder %v613, %v1733
          %vm1739 = vcmp.eq.s32.totalorder %v614, %v1733
          %vm1740 = vcmp.eq.s32.totalorder %v615, %v1733
          %vm1741 = vcmp.eq.s32.totalorder %v616, %v1733
          %vm1742 = vmor %vm1723, %vm1734
          %vm1743 = vmor %vm1724, %vm1735
          %vm1744 = vmor %vm1725, %vm1736
          %vm1745 = vmor %vm1726, %vm1737
          %vm1746 = vmor %vm1727, %vm1738
          %vm1747 = vmor %vm1728, %vm1739
          %vm1748 = vmor %vm1729, %vm1740
          %vm1749 = vmor %vm1730, %vm1741
          %1750 = vset.pattern.permute.xlu0 3
          %1751 = vperm.xlu0 %1750, %v605
          %v1752 = vpop.permute.xlu0 %1751
          %vm1753 = vcmp.eq.s32.totalorder %v609, %v1752
          %vm1754 = vcmp.eq.s32.totalorder %v610, %v1752
          %vm1755 = vcmp.eq.s32.totalorder %v611, %v1752
          %vm1756 = vcmp.eq.s32.totalorder %v612, %v1752
          %vm1757 = vcmp.eq.s32.totalorder %v613, %v1752
          %vm1758 = vcmp.eq.s32.totalorder %v614, %v1752
          %vm1759 = vcmp.eq.s32.totalorder %v615, %v1752
          %vm1760 = vcmp.eq.s32.totalorder %v616, %v1752
          %vm1761 = vmor %vm1742, %vm1753
          %vm1762 = vmor %vm1743, %vm1754
          %vm1763 = vmor %vm1744, %vm1755
          %vm1764 = vmor %vm1745, %vm1756
          %vm1765 = vmor %vm1746, %vm1757
          %vm1766 = vmor %vm1747, %vm1758
          %vm1767 = vmor %vm1748, %vm1759
          %vm1768 = vmor %vm1749, %vm1760
          %v1769 = vsel %vm1761, 1, 0
          %v1770 = vsel %vm1762, 1, 0
          %v1771 = vsel %vm1763, 1, 0
          %v1772 = vsel %vm1764, 1, 0
          %v1773 = vsel %vm1765, 1, 0
          %v1774 = vsel %vm1766, 1, 0
          %v1775 = vsel %vm1767, 1, 0
          %v1776 = vsel %vm1768, 1, 0
          %v1777 = vadd.s32 %v1693, %v1769
          %v1778 = vadd.s32 %v1694, %v1770
          %v1779 = vadd.s32 %v1695, %v1771
          %v1780 = vadd.s32 %v1696, %v1772
          %v1781 = vadd.s32 %v1697, %v1773
          %v1782 = vadd.s32 %v1698, %v1774
          %v1783 = vadd.s32 %v1699, %v1775
          %v1784 = vadd.s32 %v1700, %v1776
          %1785 = vset.pattern.permute.xlu0 0
          %1786 = vperm.xlu0 %1785, %v606
          %v1787 = vpop.permute.xlu0 %1786
          %vm1788 = vcmp.eq.s32.totalorder %v609, %v1787
          %vm1789 = vcmp.eq.s32.totalorder %v610, %v1787
          %vm1790 = vcmp.eq.s32.totalorder %v611, %v1787
          %vm1791 = vcmp.eq.s32.totalorder %v612, %v1787
          %vm1792 = vcmp.eq.s32.totalorder %v613, %v1787
          %vm1793 = vcmp.eq.s32.totalorder %v614, %v1787
          %vm1794 = vcmp.eq.s32.totalorder %v615, %v1787
          %vm1795 = vcmp.eq.s32.totalorder %v616, %v1787
          %1796 = vset.pattern.permute.xlu0 1
          %1797 = vperm.xlu0 %1796, %v606
          %v1798 = vpop.permute.xlu0 %1797
          %vm1799 = vcmp.eq.s32.totalorder %v609, %v1798
          %vm1800 = vcmp.eq.s32.totalorder %v610, %v1798
          %vm1801 = vcmp.eq.s32.totalorder %v611, %v1798
          %vm1802 = vcmp.eq.s32.totalorder %v612, %v1798
          %vm1803 = vcmp.eq.s32.totalorder %v613, %v1798
          %vm1804 = vcmp.eq.s32.totalorder %v614, %v1798
          %vm1805 = vcmp.eq.s32.totalorder %v615, %v1798
          %vm1806 = vcmp.eq.s32.totalorder %v616, %v1798
          %vm1807 = vmor %vm1788, %vm1799
          %vm1808 = vmor %vm1789, %vm1800
          %vm1809 = vmor %vm1790, %vm1801
          %vm1810 = vmor %vm1791, %vm1802
          %vm1811 = vmor %vm1792, %vm1803
          %vm1812 = vmor %vm1793, %vm1804
          %vm1813 = vmor %vm1794, %vm1805
          %vm1814 = vmor %vm1795, %vm1806
          %1815 = vset.pattern.permute.xlu0 2
          %1816 = vperm.xlu0 %1815, %v606
          %v1817 = vpop.permute.xlu0 %1816
          %vm1818 = vcmp.eq.s32.totalorder %v609, %v1817
          %vm1819 = vcmp.eq.s32.totalorder %v610, %v1817
          %vm1820 = vcmp.eq.s32.totalorder %v611, %v1817
          %vm1821 = vcmp.eq.s32.totalorder %v612, %v1817
          %vm1822 = vcmp.eq.s32.totalorder %v613, %v1817
          %vm1823 = vcmp.eq.s32.totalorder %v614, %v1817
          %vm1824 = vcmp.eq.s32.totalorder %v615, %v1817
          %vm1825 = vcmp.eq.s32.totalorder %v616, %v1817
          %vm1826 = vmor %vm1807, %vm1818
          %vm1827 = vmor %vm1808, %vm1819
          %vm1828 = vmor %vm1809, %vm1820
          %vm1829 = vmor %vm1810, %vm1821
          %vm1830 = vmor %vm1811, %vm1822
          %vm1831 = vmor %vm1812, %vm1823
          %vm1832 = vmor %vm1813, %vm1824
          %vm1833 = vmor %vm1814, %vm1825
          %1834 = vset.pattern.permute.xlu0 3
          %1835 = vperm.xlu0 %1834, %v606
          %v1836 = vpop.permute.xlu0 %1835
          %vm1837 = vcmp.eq.s32.totalorder %v609, %v1836
          %vm1838 = vcmp.eq.s32.totalorder %v610, %v1836
          %vm1839 = vcmp.eq.s32.totalorder %v611, %v1836
          %vm1840 = vcmp.eq.s32.totalorder %v612, %v1836
          %vm1841 = vcmp.eq.s32.totalorder %v613, %v1836
          %vm1842 = vcmp.eq.s32.totalorder %v614, %v1836
          %vm1843 = vcmp.eq.s32.totalorder %v615, %v1836
          %vm1844 = vcmp.eq.s32.totalorder %v616, %v1836
          %vm1845 = vmor %vm1826, %vm1837
          %vm1846 = vmor %vm1827, %vm1838
          %vm1847 = vmor %vm1828, %vm1839
          %vm1848 = vmor %vm1829, %vm1840
          %vm1849 = vmor %vm1830, %vm1841
          %vm1850 = vmor %vm1831, %vm1842
          %vm1851 = vmor %vm1832, %vm1843
          %vm1852 = vmor %vm1833, %vm1844
          %v1853 = vsel %vm1845, 1, 0
          %v1854 = vsel %vm1846, 1, 0
          %v1855 = vsel %vm1847, 1, 0
          %v1856 = vsel %vm1848, 1, 0
          %v1857 = vsel %vm1849, 1, 0
          %v1858 = vsel %vm1850, 1, 0
          %v1859 = vsel %vm1851, 1, 0
          %v1860 = vsel %vm1852, 1, 0
          %v1861 = vadd.s32 %v1777, %v1853
          %v1862 = vadd.s32 %v1778, %v1854
          %v1863 = vadd.s32 %v1779, %v1855
          %v1864 = vadd.s32 %v1780, %v1856
          %v1865 = vadd.s32 %v1781, %v1857
          %v1866 = vadd.s32 %v1782, %v1858
          %v1867 = vadd.s32 %v1783, %v1859
          %v1868 = vadd.s32 %v1784, %v1860
          %1869 = vset.pattern.permute.xlu0 0
          %1870 = vperm.xlu0 %1869, %v607
          %v1871 = vpop.permute.xlu0 %1870
          %vm1872 = vcmp.eq.s32.totalorder %v609, %v1871
          %vm1873 = vcmp.eq.s32.totalorder %v610, %v1871
          %vm1874 = vcmp.eq.s32.totalorder %v611, %v1871
          %vm1875 = vcmp.eq.s32.totalorder %v612, %v1871
          %vm1876 = vcmp.eq.s32.totalorder %v613, %v1871
          %vm1877 = vcmp.eq.s32.totalorder %v614, %v1871
          %vm1878 = vcmp.eq.s32.totalorder %v615, %v1871
          %vm1879 = vcmp.eq.s32.totalorder %v616, %v1871
          %1880 = vset.pattern.permute.xlu0 1
          %1881 = vperm.xlu0 %1880, %v607
          %v1882 = vpop.permute.xlu0 %1881
          %vm1883 = vcmp.eq.s32.totalorder %v609, %v1882
          %vm1884 = vcmp.eq.s32.totalorder %v610, %v1882
          %vm1885 = vcmp.eq.s32.totalorder %v611, %v1882
          %vm1886 = vcmp.eq.s32.totalorder %v612, %v1882
          %vm1887 = vcmp.eq.s32.totalorder %v613, %v1882
          %vm1888 = vcmp.eq.s32.totalorder %v614, %v1882
          %vm1889 = vcmp.eq.s32.totalorder %v615, %v1882
          %vm1890 = vcmp.eq.s32.totalorder %v616, %v1882
          %vm1891 = vmor %vm1872, %vm1883
          %vm1892 = vmor %vm1873, %vm1884
          %vm1893 = vmor %vm1874, %vm1885
          %vm1894 = vmor %vm1875, %vm1886
          %vm1895 = vmor %vm1876, %vm1887
          %vm1896 = vmor %vm1877, %vm1888
          %vm1897 = vmor %vm1878, %vm1889
          %vm1898 = vmor %vm1879, %vm1890
          %1899 = vset.pattern.permute.xlu0 2
          %1900 = vperm.xlu0 %1899, %v607
          %v1901 = vpop.permute.xlu0 %1900
          %vm1902 = vcmp.eq.s32.totalorder %v609, %v1901
          %vm1903 = vcmp.eq.s32.totalorder %v610, %v1901
          %vm1904 = vcmp.eq.s32.totalorder %v611, %v1901
          %vm1905 = vcmp.eq.s32.totalorder %v612, %v1901
          %vm1906 = vcmp.eq.s32.totalorder %v613, %v1901
          %vm1907 = vcmp.eq.s32.totalorder %v614, %v1901
          %vm1908 = vcmp.eq.s32.totalorder %v615, %v1901
          %vm1909 = vcmp.eq.s32.totalorder %v616, %v1901
          %vm1910 = vmor %vm1891, %vm1902
          %vm1911 = vmor %vm1892, %vm1903
          %vm1912 = vmor %vm1893, %vm1904
          %vm1913 = vmor %vm1894, %vm1905
          %vm1914 = vmor %vm1895, %vm1906
          %vm1915 = vmor %vm1896, %vm1907
          %vm1916 = vmor %vm1897, %vm1908
          %vm1917 = vmor %vm1898, %vm1909
          %1918 = vset.pattern.permute.xlu0 3
          %1919 = vperm.xlu0 %1918, %v607
          %v1920 = vpop.permute.xlu0 %1919
          %vm1921 = vcmp.eq.s32.totalorder %v609, %v1920
          %vm1922 = vcmp.eq.s32.totalorder %v610, %v1920
          %vm1923 = vcmp.eq.s32.totalorder %v611, %v1920
          %vm1924 = vcmp.eq.s32.totalorder %v612, %v1920
          %vm1925 = vcmp.eq.s32.totalorder %v613, %v1920
          %vm1926 = vcmp.eq.s32.totalorder %v614, %v1920
          %vm1927 = vcmp.eq.s32.totalorder %v615, %v1920
          %vm1928 = vcmp.eq.s32.totalorder %v616, %v1920
          %vm1929 = vmor %vm1910, %vm1921
          %vm1930 = vmor %vm1911, %vm1922
          %vm1931 = vmor %vm1912, %vm1923
          %vm1932 = vmor %vm1913, %vm1924
          %vm1933 = vmor %vm1914, %vm1925
          %vm1934 = vmor %vm1915, %vm1926
          %vm1935 = vmor %vm1916, %vm1927
          %vm1936 = vmor %vm1917, %vm1928
          %v1937 = vsel %vm1929, 1, 0
          %v1938 = vsel %vm1930, 1, 0
          %v1939 = vsel %vm1931, 1, 0
          %v1940 = vsel %vm1932, 1, 0
          %v1941 = vsel %vm1933, 1, 0
          %v1942 = vsel %vm1934, 1, 0
          %v1943 = vsel %vm1935, 1, 0
          %v1944 = vsel %vm1936, 1, 0
          %v1945 = vadd.s32 %v1861, %v1937
          %v1946 = vadd.s32 %v1862, %v1938
          %v1947 = vadd.s32 %v1863, %v1939
          %v1948 = vadd.s32 %v1864, %v1940
          %v1949 = vadd.s32 %v1865, %v1941
          %v1950 = vadd.s32 %v1866, %v1942
          %v1951 = vadd.s32 %v1867, %v1943
          %v1952 = vadd.s32 %v1868, %v1944
          %v1953 = vld [vmem:[#allocation2] sm:$0xff]
          %v1954 = vld [vmem:[#allocation2 + $0x8] sm:$0xff]
          %v1955 = vld [vmem:[#allocation2 + $0x10] sm:$0xff]
          %v1956 = vld [vmem:[#allocation2 + $0x18] sm:$0xff]
          %v1957 = vld [vmem:[#allocation2 + $0x20] sm:$0xff]
          %v1958 = vld [vmem:[#allocation2 + $0x28] sm:$0xff]
          %v1959 = vld [vmem:[#allocation2 + $0x30] sm:$0xff]
          %v1960 = vld [vmem:[#allocation2 + $0x38] sm:$0xff]
          %v1961 = vadd.s32 %v1953, %v1945
          %v1962 = vadd.s32 %v1954, %v1946
          %v1963 = vadd.s32 %v1955, %v1947
          %v1964 = vadd.s32 %v1956, %v1948
          %v1965 = vadd.s32 %v1957, %v1949
          %v1966 = vadd.s32 %v1958, %v1950
          %v1967 = vadd.s32 %v1959, %v1951
          %v1968 = vadd.s32 %v1960, %v1952
          %1969 = vst [vmem:[#allocation2] sm:$0xff] %v1961
          %1970 = vst [vmem:[#allocation2 + $0x8] sm:$0xff] %v1962
          %1971 = vst [vmem:[#allocation2 + $0x10] sm:$0xff] %v1963
          %1972 = vst [vmem:[#allocation2 + $0x18] sm:$0xff] %v1964
          %1973 = vst [vmem:[#allocation2 + $0x20] sm:$0xff] %v1965
          %1974 = vst [vmem:[#allocation2 + $0x28] sm:$0xff] %v1966
          %1975 = vst [vmem:[#allocation2 + $0x30] sm:$0xff] %v1967
          %1976 = vst [vmem:[#allocation2 + $0x38] sm:$0xff] %v1968
        $region40: #{tpu_custom_call.1} parent=31 // pred_fallthru
          _
        // Predicated region
        $region41: #{tpu_custom_call.1} parent=31 // pred_check
          %p1977 = pneg %p126
        $region42: #{tpu_custom_call.1} parent=31 // pred_check_branch
          %1979 = sbr.rel (%p1977) target = $region44
        $region43: #{tpu_custom_call.1} parent=31 // pred_region
          %1981 = vsyncadd [#allocation3], 0
          %s1982 = smul.addr %s19, 8
          %s1983 = smul.addr %s1982, 8
          %s1984 = scalar_lea.hbm %s3, %s1983
          %s1986 = sshll.u32 [#allocation2], 4
          %s1987 = int_to_ptr.vmem [resolvable:$true] %s1986
          %s1988 = sshll.u32 %s1984, 4
          %s1989 = int_to_ptr.hbm [resolvable:$true] %s1988
          %1991 = dma.vmem_to_hbm [thread:$0]  %s1987, 1024, %s1989, [#allocation3]
        $region44: #{tpu_custom_call.1} parent=31 // pred_fallthru
          _
        // Predicated region
        $region45: #{tpu_custom_call.1} parent=31 // pred_check
          %p1992 = pneg %p126
        $region46: #{tpu_custom_call.1} parent=31 // pred_check_branch
          %1994 = sbr.rel (%p1992) target = $region48
        $region47: #{tpu_custom_call.1} parent=31 // pred_region
          %1996 = dma.done [#allocation3], 1024
        $region48: #{tpu_custom_call.1} parent=31 // pred_fallthru
          _
      $region32: #{tpu_custom_call.1} parent=5 // pred_fallthru
        _
      %p1997 = scmp.le.s32.totalorder 2, %s10
      // Predicated region
      $region49: #{tpu_custom_call.1} parent=5 // pred_check
        %p1998 = pneg %p1997
      $region50: #{tpu_custom_call.1} parent=5 // pred_check_branch
        %2000 = sbr.rel (%p1998) target = $region52
      $region51: #{tpu_custom_call.1} parent=5 // pred_region
        %s2001 = ssub.s32 %s10, 2
      $region52: #{tpu_custom_call.1} parent=5 // pred_fallthru
        _
    $region6: #{tpu_custom_call.1} parent=1 // loop_footer
      %s14 = sadd.s32 1, %s10
    $region7: #{tpu_custom_call.1} parent=1 // loop_footer_branch
      %9 = sbr.rel target = $region3
    $region8: #{tpu_custom_call.1} parent=1 // loop_exit
      _
    %2002 = vsyncpa [#allocation3], 1
    %s2003 = scalar_lea.sflag [#allocation3], 1
    %2004 = vsyncpa %s2003, 1

</llo_original>
